<compile_context>
chip_gen: v7x
topology: tpu7x:2x2x1
jax: 0.10.0
libtpu: 0.0.40
codegen_flags: <defaults>
</compile_context>

<pallas_src>
import functools

import numpy as np

import jax
import jax.numpy as jnp
from jax import lax
from jax.experimental import pallas as pl
from jax.experimental.pallas import tpu as pltpu

BN_EPS = 1e-5

# bf16 data operands (per perf review): halves the HBM read of the activation
# image and keeps the MXU on its fast path.  Accumulation / BN math stays f32.
# Flip to jnp.float32 for bit-tight checking against the f32 reference.
MATMUL_DTYPE = jnp.bfloat16


# ---------------------------------------------------------------------------
# Shared conv core: fused Conv(Kx1) -> Conv(1xK) on ONE flat padded image.
#
# The padded image is a flat (C_in, Hp*Wt) matrix (Wt = W + 4*pad covers the
# W padding of BOTH convs):
#   * Conv(Kx1) over H: tap k is the flat image shifted by k*Wt lanes.
#   * Conv(1xK) over W: tap k is the conv-1 plane shifted by k lanes.
# Conv-1's output is embedded between zero edges in a VMEM scratch, so the
# conv-2 dots directly produce the full (C_out, H2*Wt) plane (conv-2's
# H-padding rows come out as exact zeros) -> single aligned output store.
# ---------------------------------------------------------------------------
def _fused_conv(xf_ref, a1_ref, a2_ref, y1_scr, *, K, Wt, Mo1, M2, pwt):
    c_mid = y1_scr.shape[0]
    w1e = y1_scr.shape[1]          # = M2 + K - 1

    # ---- Conv(K x 1) over H -------------------------------------------------
    y1 = jnp.dot(a1_ref[0], xf_ref[0, :, 0:Mo1],
                 preferred_element_type=jnp.float32)
    for k in range(1, K):
        y1 = y1 + jnp.dot(a1_ref[k], xf_ref[0, :, k * Wt:k * Wt + Mo1],
                          preferred_element_type=jnp.float32)

    # Zero-extended conv-1 plane: [pwt zeros | conv-1 (Mo1) | pwt + K-1 zeros].
    # Edges are re-zeroed every step (cheap VMEM stores; scratch is not
    # guaranteed zero-initialized and the batch axis is "parallel").
    if pwt:
        y1_scr[:, 0:pwt] = jnp.zeros((c_mid, pwt), y1_scr.dtype)
    y1_scr[:, pwt + Mo1:] = jnp.zeros((c_mid, w1e - pwt - Mo1), y1_scr.dtype)
    y1_scr[:, pwt:pwt + Mo1] = y1.astype(y1_scr.dtype)   # stays in VMEM

    # ---- Conv(1 x K) over W -> full (C_out, M2) plane ------------------------
    y2 = jnp.dot(a2_ref[0], y1_scr[:, 0:M2], preferred_element_type=jnp.float32)
    for k in range(1, K):
        y2 = y2 + jnp.dot(a2_ref[k], y1_scr[:, k:k + M2],
                          preferred_element_type=jnp.float32)
    return y2


# ---------------------------------------------------------------------------
# Pass 1: fused conv -> per-image BatchNorm partial sums only (no conv output
# ever reaches HBM).
# ---------------------------------------------------------------------------
def _conv_stats_kernel(xf_ref, a1_ref, a2_ref, mask_ref,
                       sum_ref, sq_ref, y1_scr, *, K, Wt, Mo1, M2, pwt):
    y2 = _fused_conv(xf_ref, a1_ref, a2_ref, y1_scr,
                     K=K, Wt=Wt, Mo1=Mo1, M2=M2, pwt=pwt)
    # Precomputed mask zeroes the columns whose (flat index mod Wt) >= W2
    # (taps would wrap into the next row) so they don't pollute the BN stats.
    y2m = y2 * mask_ref[...]
    sum_ref[0] = jnp.sum(y2m, axis=1, keepdims=True)
    sq_ref[0] = jnp.sum(y2m * y2m, axis=1, keepdims=True)


# ---------------------------------------------------------------------------
# Pass 2: recompute the fused conv, apply y*scale + bias and ReLU, write the
# full padded output plane with ONE aligned lane-dense store.
# ---------------------------------------------------------------------------
def _conv_bn_relu_kernel(xf_ref, a1_ref, a2_ref, scale_ref, bias_ref,
                         o_ref, y1_scr, *, K, Wt, Mo1, M2, pwt):
    y2 = _fused_conv(xf_ref, a1_ref, a2_ref, y1_scr,
                     K=K, Wt=Wt, Mo1=Mo1, M2=M2, pwt=pwt)
    o_ref[0] = jnp.maximum(y2 * scale_ref[...] + bias_ref[...],
                           0.0).astype(o_ref.dtype)


# ---------------------------------------------------------------------------
# FacConv forward
# ---------------------------------------------------------------------------
def fac_conv_forward(x, w1, w2, gamma, beta, *, stride, padding):
    """x: (N, C_in, H, W) f32. w1: (C_in, C_in, K, 1). w2: (C_out, C_in, 1, K)."""
    if stride != 1:
        raise NotImplementedError("fused FacConv kernel supports stride == 1 only")

    N, C_in, H, W = x.shape
    C_out = w2.shape[0]
    K = w1.shape[2]
    p = padding

    Hp = H + 2 * p                 # conv-1 padded height
    Wt = W + 4 * p                 # combined W padding of conv-1 (p) and conv-2 (p)
    Ho1 = Hp - K + 1               # conv-1 output height
    H2 = Ho1 + 2 * p               # conv-2 output height
    W2 = Wt - K + 1                # conv-2 output width
    Mi = Hp * Wt                   # flat padded image size
    Mo1 = Ho1 * Wt                 # flat conv-1 output size
    M2 = H2 * Wt                   # flat conv-2 output plane size (padded W layout)
    pwt = p * Wt
    W1e = M2 + K - 1               # zero-extended conv-1 scratch width

    # ---- layout prep: ONE pad (+ bf16 cast), no im2col, no transposes -------
    xf = jnp.pad(x.astype(MATMUL_DTYPE),
                 ((0, 0), (0, 0), (p, p), (2 * p, 2 * p))).reshape(N, C_in, Mi)
    a1 = jnp.transpose(w1[:, :, :, 0], (2, 0, 1)).astype(MATMUL_DTYPE)  # (K, C_in, C_in)
    a2 = jnp.transpose(w2[:, :, 0, :], (2, 0, 1)).astype(MATMUL_DTYPE)  # (K, C_out, C_in)

    # Grid-invariant column-validity mask, hoisted out of the kernels.
    col = jnp.arange(M2, dtype=jnp.int32) % Wt
    mask = (col < W2).astype(jnp.float32).reshape(1, M2)

    itemsize = np.dtype(MATMUL_DTYPE).itemsize
    conv_flops = 2 * K * C_in * (C_in * Mo1 + C_out * M2)       # per image
    w_bytes = K * C_in * (C_in + C_out) * itemsize

    cparams = pltpu.CompilerParams(
        dimension_semantics=("parallel",),
        vmem_limit_bytes=32 * 1024 * 1024)

    # ---- pass 1: conv -> per-image (sum, sum^2) -----------------------------
    kernel1 = functools.partial(_conv_stats_kernel,
                                K=K, Wt=Wt, Mo1=Mo1, M2=M2, pwt=pwt)
    ssum, ssq = pl.pallas_call(
        kernel1,
        out_shape=(jax.ShapeDtypeStruct((N, C_out, 1), jnp.float32),
                   jax.ShapeDtypeStruct((N, C_out, 1), jnp.float32)),
        grid=(N,),
        in_specs=[pl.BlockSpec((1, C_in, Mi), lambda n: (n, 0, 0)),
                  pl.BlockSpec((K, C_in, C_in), lambda n: (0, 0, 0)),
                  pl.BlockSpec((K, C_out, C_in), lambda n: (0, 0, 0)),
                  pl.BlockSpec((1, M2), lambda n: (0, 0))],
        out_specs=(pl.BlockSpec((1, C_out, 1), lambda n: (n, 0, 0)),
                   pl.BlockSpec((1, C_out, 1), lambda n: (n, 0, 0))),
        scratch_shapes=[pltpu.VMEM((C_in, W1e), MATMUL_DTYPE)],
        compiler_params=cparams,
        cost_estimate=pl.CostEstimate(
            flops=N * (conv_flops + 3 * C_out * M2), transcendentals=0,
            bytes_accessed=N * C_in * Mi * itemsize + w_bytes + M2 * 4
                           + 2 * N * C_out * 4),
    )(xf, a1, a2, mask)

    # ---- tiny cross-image BN reduction + scale/bias precompute (f32 JAX) ----
    count = N * H2 * W2
    mean = jnp.sum(ssum[:, :, 0], axis=0) / count
    ex2 = jnp.sum(ssq[:, :, 0], axis=0) / count
    var = jnp.maximum(ex2 - mean * mean, 0.0)          # biased variance (PyTorch BN)
    scale = gamma * lax.rsqrt(var + BN_EPS)
    bias = beta - mean * scale
    scale_col = scale.reshape(C_out, 1).astype(jnp.float32)
    bias_col = bias.reshape(C_out, 1).astype(jnp.float32)

    # ---- pass 2: recompute conv, apply BN + ReLU, single full store ---------
    kernel2 = functools.partial(_conv_bn_relu_kernel,
                                K=K, Wt=Wt, Mo1=Mo1, M2=M2, pwt=pwt)
    out_flat = pl.pallas_call(
        kernel2,
        out_shape=jax.ShapeDtypeStruct((N, C_out, M2), jnp.float32),
        grid=(N,),
        in_specs=[pl.BlockSpec((1, C_in, Mi), lambda n: (n, 0, 0)),
                  pl.BlockSpec((K, C_in, C_in), lambda n: (0, 0, 0)),
                  pl.BlockSpec((K, C_out, C_in), lambda n: (0, 0, 0)),
                  pl.BlockSpec((C_out, 1), lambda n: (0, 0)),
                  pl.BlockSpec((C_out, 1), lambda n: (0, 0))],
        out_specs=pl.BlockSpec((1, C_out, M2), lambda n: (n, 0, 0)),
        scratch_shapes=[pltpu.VMEM((C_in, W1e), MATMUL_DTYPE)],
        compiler_params=cparams,
        cost_estimate=pl.CostEstimate(
            flops=N * (conv_flops + 3 * C_out * M2), transcendentals=0,
            bytes_accessed=N * C_in * Mi * itemsize + w_bytes + 2 * C_out * 4
                           + N * C_out * M2 * 4),
    )(xf, a1, a2, scale_col, bias_col)

    # (N*C_out, H2*Wt) is already channel-major: NCHW needs only this slice.
    return out_flat.reshape(N, C_out, H2, Wt)[:, :, :, :W2]


# Pure-JAX reference (lax conv + BN + ReLU) for a correctness check.
def _reference(x, w1, w2, gamma, beta, stride, padding):
    dn = ("NCHW", "OIHW", "NCHW")
    pad2 = [(padding, padding), (padding, padding)]
    y = lax.conv_general_dilated(x, w1, (stride, stride), pad2, dimension_numbers=dn)
    y = lax.conv_general_dilated(y, w2, (stride, stride), pad2, dimension_numbers=dn)
    mean = y.mean(axis=(0, 2, 3), keepdims=True)
    var = ((y - mean) ** 2).mean(axis=(0, 2, 3), keepdims=True)
    y = (y - mean) * lax.rsqrt(var + BN_EPS)
    y = y * gamma.reshape(1, -1, 1, 1) + beta.reshape(1, -1, 1, 1)
    return jnp.maximum(y, 0.0)


if __name__ == "__main__":
    # Small, deterministic configuration.
    Nb, C_in, H, W = 2, 4, 16, 16
    C_out, K, stride, padding = 8, 3, 1, 1

    key = jax.random.PRNGKey(0)
    kx, kw1, kw2 = jax.random.split(key, 3)
    x = jax.random.normal(kx, (Nb, C_in, H, W), dtype=jnp.float32)
    w1 = 0.1 * jax.random.normal(kw1, (C_in, C_in, K, 1), dtype=jnp.float32)
    w2 = 0.1 * jax.random.normal(kw2, (C_out, C_in, 1, K), dtype=jnp.float32)
    gamma = jnp.ones((C_out,), dtype=jnp.float32)   # BatchNorm2d affine init
    beta = jnp.zeros((C_out,), dtype=jnp.float32)

    fwd = jax.jit(fac_conv_forward, static_argnames=("stride", "padding"))
    out = jax.block_until_ready(fwd(x, w1, w2, gamma, beta,
                                    stride=stride, padding=padding))

    ref = jax.block_until_ready(_reference(x, w1, w2, gamma, beta, stride, padding))
    assert out.shape == ref.shape, (out.shape, ref.shape)
    # Tolerance reflects bf16 data operands (per perf review); the f32 path
    # matches to ~1e-5.
    tol = 1e-4 if MATMUL_DTYPE == jnp.float32 else 5e-2
    err = float(jnp.abs(out - ref).max())
    assert jnp.allclose(out, ref, atol=tol, rtol=tol), err

    print("KERNEL_OK")
</pallas_src>

<mosaic_0001>
module attributes {stable_mosaic.version = 11 : i64} {
  func.func @_conv_stats_kernel(%arg0: i32, %arg1: memref<1x4x360xbf16, #tpu.memory_space<vmem>>, %arg2: memref<3x4x4xbf16, #tpu.memory_space<vmem>>, %arg3: memref<3x8x4xbf16, #tpu.memory_space<vmem>>, %arg4: memref<1x360xf32, #tpu.memory_space<vmem>>, %arg5: memref<1x8x1xf32, #tpu.memory_space<vmem>>, %arg6: memref<1x8x1xf32, #tpu.memory_space<vmem>>, %arg7: memref<4x362xbf16, #tpu.memory_space<vmem>>) attributes {dimension_semantics = [#tpu.dimension_semantics<parallel>], iteration_bounds = array<i64: 2>, scalar_prefetch = 0 : i64, scratch_operands = 1 : i64, tpu.core_type = #tpu.core_type<tc>, window_params = [{transform_indices = @transform_0, window_bounds = array<i64: 1, 4, 360>}, {pipeline_mode = #tpu.pipeline_mode<synchronous>, transform_indices = @transform_1, window_bounds = array<i64: 3, 4, 4>}, {pipeline_mode = #tpu.pipeline_mode<synchronous>, transform_indices = @transform_2, window_bounds = array<i64: 3, 8, 4>}, {pipeline_mode = #tpu.pipeline_mode<synchronous>, transform_indices = @transform_3, window_bounds = array<i64: 1, 360>}, {transform_indices = @transform_4, window_bounds = array<i64: 1, 8, 1>}, {transform_indices = @transform_5, window_bounds = array<i64: 1, 8, 1>}]} {
    %c0 = arith.constant 0 : index
    %c0_0 = arith.constant 0 : index
    %c0_1 = arith.constant 0 : index
    %0 = vector.load %arg2[%c0, %c0_0, %c0_1] : memref<3x4x4xbf16, #tpu.memory_space<vmem>>, vector<1x4x4xbf16>
    %1 = vector.shape_cast %0 : vector<1x4x4xbf16> to vector<4x4xbf16>
    %c0_2 = arith.constant 0 : index
    %c0_3 = arith.constant 0 : index
    %c0_4 = arith.constant 0 : index
    %2 = vector.load %arg1[%c0_2, %c0_3, %c0_4] : memref<1x4x360xbf16, #tpu.memory_space<vmem>>, vector<1x4x320xbf16>
    %3 = vector.shape_cast %2 : vector<1x4x320xbf16> to vector<4x320xbf16>
    %cst = arith.constant dense<0.000000e+00> : vector<4x320xf32>
    %4 = tpu.matmul %1, %3, %cst {dimension_numbers = #tpu.dot_dimension_numbers<[1], [0], [0], [1], [0, 0, 1, 1], [], []>} : vector<4x4xbf16>, vector<4x320xbf16>, vector<4x320xf32> -> vector<4x320xf32>
    %c1 = arith.constant 1 : index
    %c0_5 = arith.constant 0 : index
    %c0_6 = arith.constant 0 : index
    %5 = vector.load %arg2[%c1, %c0_5, %c0_6] : memref<3x4x4xbf16, #tpu.memory_space<vmem>>, vector<1x4x4xbf16>
    %6 = vector.shape_cast %5 : vector<1x4x4xbf16> to vector<4x4xbf16>
    %c0_7 = arith.constant 0 : index
    %c0_8 = arith.constant 0 : index
    %c20 = arith.constant 20 : index
    %7 = vector.load %arg1[%c0_7, %c0_8, %c20] : memref<1x4x360xbf16, #tpu.memory_space<vmem>>, vector<1x4x320xbf16>
    %8 = vector.shape_cast %7 : vector<1x4x320xbf16> to vector<4x320xbf16>
    %cst_9 = arith.constant dense<0.000000e+00> : vector<4x320xf32>
    %9 = tpu.matmul %6, %8, %cst_9 {dimension_numbers = #tpu.dot_dimension_numbers<[1], [0], [0], [1], [0, 0, 1, 1], [], []>} : vector<4x4xbf16>, vector<4x320xbf16>, vector<4x320xf32> -> vector<4x320xf32>
    %10 = arith.addf %4, %9 : vector<4x320xf32>
    %c2 = arith.constant 2 : index
    %c0_10 = arith.constant 0 : index
    %c0_11 = arith.constant 0 : index
    %11 = vector.load %arg2[%c2, %c0_10, %c0_11] : memref<3x4x4xbf16, #tpu.memory_space<vmem>>, vector<1x4x4xbf16>
    %12 = vector.shape_cast %11 : vector<1x4x4xbf16> to vector<4x4xbf16>
    %c0_12 = arith.constant 0 : index
    %c0_13 = arith.constant 0 : index
    %c40 = arith.constant 40 : index
    %13 = vector.load %arg1[%c0_12, %c0_13, %c40] : memref<1x4x360xbf16, #tpu.memory_space<vmem>>, vector<1x4x320xbf16>
    %14 = vector.shape_cast %13 : vector<1x4x320xbf16> to vector<4x320xbf16>
    %cst_14 = arith.constant dense<0.000000e+00> : vector<4x320xf32>
    %15 = tpu.matmul %12, %14, %cst_14 {dimension_numbers = #tpu.dot_dimension_numbers<[1], [0], [0], [1], [0, 0, 1, 1], [], []>} : vector<4x4xbf16>, vector<4x320xbf16>, vector<4x320xf32> -> vector<4x320xf32>
    %16 = arith.addf %10, %15 : vector<4x320xf32>
    %cst_15 = arith.constant 0.000000e+00 : bf16
    %17 = vector.broadcast %cst_15 : bf16 to vector<4x20xbf16>
    %c0_16 = arith.constant 0 : index
    %c0_17 = arith.constant 0 : index
    %18 = vector.load %arg7[%c0_16, %c0_17] : memref<4x362xbf16, #tpu.memory_space<vmem>>, vector<4x20xbf16>
    tpu.vector_store %arg7[%c0_16, %c0_17], %17 {strides = array<i32>} : memref<4x362xbf16, #tpu.memory_space<vmem>>, vector<4x20xbf16>,
    %cst_18 = arith.constant 0.000000e+00 : bf16
    %19 = vector.broadcast %cst_18 : bf16 to vector<4x22xbf16>
    %c0_19 = arith.constant 0 : index
    %c340 = arith.constant 340 : index
    %20 = vector.load %arg7[%c0_19, %c340] : memref<4x362xbf16, #tpu.memory_space<vmem>>, vector<4x22xbf16>
    tpu.vector_store %arg7[%c0_19, %c340], %19 {strides = array<i32>} : memref<4x362xbf16, #tpu.memory_space<vmem>>, vector<4x22xbf16>,
    %21 = arith.truncf %16 : vector<4x320xf32> to vector<4x320xbf16>
    %c0_20 = arith.constant 0 : index
    %c20_21 = arith.constant 20 : index
    %22 = vector.load %arg7[%c0_20, %c20_21] : memref<4x362xbf16, #tpu.memory_space<vmem>>, vector<4x320xbf16>
    tpu.vector_store %arg7[%c0_20, %c20_21], %21 {strides = array<i32>} : memref<4x362xbf16, #tpu.memory_space<vmem>>, vector<4x320xbf16>,
    %c0_22 = arith.constant 0 : index
    %c0_23 = arith.constant 0 : index
    %c0_24 = arith.constant 0 : index
    %23 = vector.load %arg3[%c0_22, %c0_23, %c0_24] : memref<3x8x4xbf16, #tpu.memory_space<vmem>>, vector<1x8x4xbf16>
    %24 = vector.shape_cast %23 : vector<1x8x4xbf16> to vector<8x4xbf16>
    %c0_25 = arith.constant 0 : index
    %c0_26 = arith.constant 0 : index
    %25 = vector.load %arg7[%c0_25, %c0_26] : memref<4x362xbf16, #tpu.memory_space<vmem>>, vector<4x360xbf16>
    %cst_27 = arith.constant dense<0.000000e+00> : vector<8x360xf32>
    %26 = tpu.matmul %24, %25, %cst_27 {dimension_numbers = #tpu.dot_dimension_numbers<[1], [0], [0], [1], [0, 0, 1, 1], [], []>} : vector<8x4xbf16>, vector<4x360xbf16>, vector<8x360xf32> -> vector<8x360xf32>
    %c1_28 = arith.constant 1 : index
    %c0_29 = arith.constant 0 : index
    %c0_30 = arith.constant 0 : index
    %27 = vector.load %arg3[%c1_28, %c0_29, %c0_30] : memref<3x8x4xbf16, #tpu.memory_space<vmem>>, vector<1x8x4xbf16>
    %28 = vector.shape_cast %27 : vector<1x8x4xbf16> to vector<8x4xbf16>
    %c0_31 = arith.constant 0 : index
    %c1_32 = arith.constant 1 : index
    %29 = vector.load %arg7[%c0_31, %c1_32] : memref<4x362xbf16, #tpu.memory_space<vmem>>, vector<4x360xbf16>
    %cst_33 = arith.constant dense<0.000000e+00> : vector<8x360xf32>
    %30 = tpu.matmul %28, %29, %cst_33 {dimension_numbers = #tpu.dot_dimension_numbers<[1], [0], [0], [1], [0, 0, 1, 1], [], []>} : vector<8x4xbf16>, vector<4x360xbf16>, vector<8x360xf32> -> vector<8x360xf32>
    %31 = arith.addf %26, %30 : vector<8x360xf32>
    %c2_34 = arith.constant 2 : index
    %c0_35 = arith.constant 0 : index
    %c0_36 = arith.constant 0 : index
    %32 = vector.load %arg3[%c2_34, %c0_35, %c0_36] : memref<3x8x4xbf16, #tpu.memory_space<vmem>>, vector<1x8x4xbf16>
    %33 = vector.shape_cast %32 : vector<1x8x4xbf16> to vector<8x4xbf16>
    %c0_37 = arith.constant 0 : index
    %c2_38 = arith.constant 2 : index
    %34 = vector.load %arg7[%c0_37, %c2_38] : memref<4x362xbf16, #tpu.memory_space<vmem>>, vector<4x360xbf16>
    %cst_39 = arith.constant dense<0.000000e+00> : vector<8x360xf32>
    %35 = tpu.matmul %33, %34, %cst_39 {dimension_numbers = #tpu.dot_dimension_numbers<[1], [0], [0], [1], [0, 0, 1, 1], [], []>} : vector<8x4xbf16>, vector<4x360xbf16>, vector<8x360xf32> -> vector<8x360xf32>
    %36 = arith.addf %31, %35 : vector<8x360xf32>
    %c0_40 = arith.constant 0 : index
    %c0_41 = arith.constant 0 : index
    %37 = vector.load %arg4[%c0_40, %c0_41] : memref<1x360xf32, #tpu.memory_space<vmem>>, vector<1x360xf32>
    %38 = vector.broadcast %37 : vector<1x360xf32> to vector<8x360xf32>
    %39 = arith.mulf %36, %38 : vector<8x360xf32>
    %cst_42 = arith.constant dense<0.000000e+00> : vector<8xf32>
    %40 = vector.multi_reduction <add>, %39, %cst_42 [1] : vector<8x360xf32> to vector<8xf32>
    %41 = vector.shape_cast %40 : vector<8xf32> to vector<8x1xf32>
    %c0_43 = arith.constant 0 : index
    %c0_44 = arith.constant 0 : index
    %c0_45 = arith.constant 0 : index
    %42 = vector.load %arg5[%c0_43, %c0_44, %c0_45] : memref<1x8x1xf32, #tpu.memory_space<vmem>>, vector<1x8x1xf32>
    %43 = vector.shape_cast %42 : vector<1x8x1xf32> to vector<8x1xf32>
    %44 = vector.shape_cast %41 : vector<8x1xf32> to vector<1x8x1xf32>
    tpu.vector_store %arg5[%c0_43, %c0_44, %c0_45], %44 {strides = array<i32>} : memref<1x8x1xf32, #tpu.memory_space<vmem>>, vector<1x8x1xf32>,
    %45 = arith.mulf %39, %39 : vector<8x360xf32>
    %cst_46 = arith.constant dense<0.000000e+00> : vector<8xf32>
    %46 = vector.multi_reduction <add>, %45, %cst_46 [1] : vector<8x360xf32> to vector<8xf32>
    %47 = vector.shape_cast %46 : vector<8xf32> to vector<8x1xf32>
    %c0_47 = arith.constant 0 : index
    %c0_48 = arith.constant 0 : index
    %c0_49 = arith.constant 0 : index
    %48 = vector.load %arg6[%c0_47, %c0_48, %c0_49] : memref<1x8x1xf32, #tpu.memory_space<vmem>>, vector<1x8x1xf32>
    %49 = vector.shape_cast %48 : vector<1x8x1xf32> to vector<8x1xf32>
    %50 = vector.shape_cast %47 : vector<8x1xf32> to vector<1x8x1xf32>
    tpu.vector_store %arg6[%c0_47, %c0_48, %c0_49], %50 {strides = array<i32>} : memref<1x8x1xf32, #tpu.memory_space<vmem>>, vector<1x8x1xf32>,
    return
  }
  func.func @transform_0(%arg0: i32) -> (i32, i32, i32) {
    %c0_i32 = arith.constant 0 : i32
    %c0_i32_0 = arith.constant 0 : i32
    %c0_i32_1 = arith.constant 0 : i32
    return %arg0, %c0_i32, %c0_i32_0 : i32, i32, i32
  }
  func.func @transform_1(%arg0: i32) -> (i32, i32, i32) {
    %c0_i32 = arith.constant 0 : i32
    %c0_i32_0 = arith.constant 0 : i32
    %c0_i32_1 = arith.constant 0 : i32
    %c0_i32_2 = arith.constant 0 : i32
    return %c0_i32, %c0_i32_0, %c0_i32_1 : i32, i32, i32
  }
  func.func @transform_2(%arg0: i32) -> (i32, i32, i32) {
    %c0_i32 = arith.constant 0 : i32
    %c0_i32_0 = arith.constant 0 : i32
    %c0_i32_1 = arith.constant 0 : i32
    %c0_i32_2 = arith.constant 0 : i32
    return %c0_i32, %c0_i32_0, %c0_i32_1 : i32, i32, i32
  }
  func.func @transform_3(%arg0: i32) -> (i32, i32) {
    %c0_i32 = arith.constant 0 : i32
    %c0_i32_0 = arith.constant 0 : i32
    %c0_i32_1 = arith.constant 0 : i32
    return %c0_i32, %c0_i32_0 : i32, i32
  }
  func.func @transform_4(%arg0: i32) -> (i32, i32, i32) {
    %c0_i32 = arith.constant 0 : i32
    %c0_i32_0 = arith.constant 0 : i32
    %c0_i32_1 = arith.constant 0 : i32
    return %arg0, %c0_i32, %c0_i32_0 : i32, i32, i32
  }
  func.func @transform_5(%arg0: i32) -> (i32, i32, i32) {
    %c0_i32 = arith.constant 0 : i32
    %c0_i32_0 = arith.constant 0 : i32
    %c0_i32_1 = arith.constant 0 : i32
    return %arg0, %c0_i32, %c0_i32_0 : i32, i32, i32
  }
}

module attributes {stable_mosaic.version = 11 : i64} {
  func.func @_conv_bn_relu_kernel(%arg0: i32, %arg1: memref<1x4x360xbf16, #tpu.memory_space<vmem>>, %arg2: memref<3x4x4xbf16, #tpu.memory_space<vmem>>, %arg3: memref<3x8x4xbf16, #tpu.memory_space<vmem>>, %arg4: memref<8x1xf32, #tpu.memory_space<vmem>>, %arg5: memref<8x1xf32, #tpu.memory_space<vmem>>, %arg6: memref<1x8x360xf32, #tpu.memory_space<vmem>>, %arg7: memref<4x362xbf16, #tpu.memory_space<vmem>>) attributes {dimension_semantics = [#tpu.dimension_semantics<parallel>], iteration_bounds = array<i64: 2>, scalar_prefetch = 0 : i64, scratch_operands = 1 : i64, tpu.core_type = #tpu.core_type<tc>, window_params = [{transform_indices = @transform_0, window_bounds = array<i64: 1, 4, 360>}, {pipeline_mode = #tpu.pipeline_mode<synchronous>, transform_indices = @transform_1, window_bounds = array<i64: 3, 4, 4>}, {pipeline_mode = #tpu.pipeline_mode<synchronous>, transform_indices = @transform_2, window_bounds = array<i64: 3, 8, 4>}, {pipeline_mode = #tpu.pipeline_mode<synchronous>, transform_indices = @transform_3, window_bounds = array<i64: 8, 1>}, {pipeline_mode = #tpu.pipeline_mode<synchronous>, transform_indices = @transform_4, window_bounds = array<i64: 8, 1>}, {transform_indices = @transform_5, window_bounds = array<i64: 1, 8, 360>}]} {
    %c0 = arith.constant 0 : index
    %c0_0 = arith.constant 0 : index
    %c0_1 = arith.constant 0 : index
    %0 = vector.load %arg2[%c0, %c0_0, %c0_1] : memref<3x4x4xbf16, #tpu.memory_space<vmem>>, vector<1x4x4xbf16>
    %1 = vector.shape_cast %0 : vector<1x4x4xbf16> to vector<4x4xbf16>
    %c0_2 = arith.constant 0 : index
    %c0_3 = arith.constant 0 : index
    %c0_4 = arith.constant 0 : index
    %2 = vector.load %arg1[%c0_2, %c0_3, %c0_4] : memref<1x4x360xbf16, #tpu.memory_space<vmem>>, vector<1x4x320xbf16>
    %3 = vector.shape_cast %2 : vector<1x4x320xbf16> to vector<4x320xbf16>
    %cst = arith.constant dense<0.000000e+00> : vector<4x320xf32>
    %4 = tpu.matmul %1, %3, %cst {dimension_numbers = #tpu.dot_dimension_numbers<[1], [0], [0], [1], [0, 0, 1, 1], [], []>} : vector<4x4xbf16>, vector<4x320xbf16>, vector<4x320xf32> -> vector<4x320xf32>
    %c1 = arith.constant 1 : index
    %c0_5 = arith.constant 0 : index
    %c0_6 = arith.constant 0 : index
    %5 = vector.load %arg2[%c1, %c0_5, %c0_6] : memref<3x4x4xbf16, #tpu.memory_space<vmem>>, vector<1x4x4xbf16>
    %6 = vector.shape_cast %5 : vector<1x4x4xbf16> to vector<4x4xbf16>
    %c0_7 = arith.constant 0 : index
    %c0_8 = arith.constant 0 : index
    %c20 = arith.constant 20 : index
    %7 = vector.load %arg1[%c0_7, %c0_8, %c20] : memref<1x4x360xbf16, #tpu.memory_space<vmem>>, vector<1x4x320xbf16>
    %8 = vector.shape_cast %7 : vector<1x4x320xbf16> to vector<4x320xbf16>
    %cst_9 = arith.constant dense<0.000000e+00> : vector<4x320xf32>
    %9 = tpu.matmul %6, %8, %cst_9 {dimension_numbers = #tpu.dot_dimension_numbers<[1], [0], [0], [1], [0, 0, 1, 1], [], []>} : vector<4x4xbf16>, vector<4x320xbf16>, vector<4x320xf32> -> vector<4x320xf32>
    %10 = arith.addf %4, %9 : vector<4x320xf32>
    %c2 = arith.constant 2 : index
    %c0_10 = arith.constant 0 : index
    %c0_11 = arith.constant 0 : index
    %11 = vector.load %arg2[%c2, %c0_10, %c0_11] : memref<3x4x4xbf16, #tpu.memory_space<vmem>>, vector<1x4x4xbf16>
    %12 = vector.shape_cast %11 : vector<1x4x4xbf16> to vector<4x4xbf16>
    %c0_12 = arith.constant 0 : index
    %c0_13 = arith.constant 0 : index
    %c40 = arith.constant 40 : index
    %13 = vector.load %arg1[%c0_12, %c0_13, %c40] : memref<1x4x360xbf16, #tpu.memory_space<vmem>>, vector<1x4x320xbf16>
    %14 = vector.shape_cast %13 : vector<1x4x320xbf16> to vector<4x320xbf16>
    %cst_14 = arith.constant dense<0.000000e+00> : vector<4x320xf32>
    %15 = tpu.matmul %12, %14, %cst_14 {dimension_numbers = #tpu.dot_dimension_numbers<[1], [0], [0], [1], [0, 0, 1, 1], [], []>} : vector<4x4xbf16>, vector<4x320xbf16>, vector<4x320xf32> -> vector<4x320xf32>
    %16 = arith.addf %10, %15 : vector<4x320xf32>
    %cst_15 = arith.constant 0.000000e+00 : bf16
    %17 = vector.broadcast %cst_15 : bf16 to vector<4x20xbf16>
    %c0_16 = arith.constant 0 : index
    %c0_17 = arith.constant 0 : index
    %18 = vector.load %arg7[%c0_16, %c0_17] : memref<4x362xbf16, #tpu.memory_space<vmem>>, vector<4x20xbf16>
    tpu.vector_store %arg7[%c0_16, %c0_17], %17 {strides = array<i32>} : memref<4x362xbf16, #tpu.memory_space<vmem>>, vector<4x20xbf16>,
    %cst_18 = arith.constant 0.000000e+00 : bf16
    %19 = vector.broadcast %cst_18 : bf16 to vector<4x22xbf16>
    %c0_19 = arith.constant 0 : index
    %c340 = arith.constant 340 : index
    %20 = vector.load %arg7[%c0_19, %c340] : memref<4x362xbf16, #tpu.memory_space<vmem>>, vector<4x22xbf16>
    tpu.vector_store %arg7[%c0_19, %c340], %19 {strides = array<i32>} : memref<4x362xbf16, #tpu.memory_space<vmem>>, vector<4x22xbf16>,
    %21 = arith.truncf %16 : vector<4x320xf32> to vector<4x320xbf16>
    %c0_20 = arith.constant 0 : index
    %c20_21 = arith.constant 20 : index
    %22 = vector.load %arg7[%c0_20, %c20_21] : memref<4x362xbf16, #tpu.memory_space<vmem>>, vector<4x320xbf16>
    tpu.vector_store %arg7[%c0_20, %c20_21], %21 {strides = array<i32>} : memref<4x362xbf16, #tpu.memory_space<vmem>>, vector<4x320xbf16>,
    %c0_22 = arith.constant 0 : index
    %c0_23 = arith.constant 0 : index
    %c0_24 = arith.constant 0 : index
    %23 = vector.load %arg3[%c0_22, %c0_23, %c0_24] : memref<3x8x4xbf16, #tpu.memory_space<vmem>>, vector<1x8x4xbf16>
    %24 = vector.shape_cast %23 : vector<1x8x4xbf16> to vector<8x4xbf16>
    %c0_25 = arith.constant 0 : index
    %c0_26 = arith.constant 0 : index
    %25 = vector.load %arg7[%c0_25, %c0_26] : memref<4x362xbf16, #tpu.memory_space<vmem>>, vector<4x360xbf16>
    %cst_27 = arith.constant dense<0.000000e+00> : vector<8x360xf32>
    %26 = tpu.matmul %24, %25, %cst_27 {dimension_numbers = #tpu.dot_dimension_numbers<[1], [0], [0], [1], [0, 0, 1, 1], [], []>} : vector<8x4xbf16>, vector<4x360xbf16>, vector<8x360xf32> -> vector<8x360xf32>
    %c1_28 = arith.constant 1 : index
    %c0_29 = arith.constant 0 : index
    %c0_30 = arith.constant 0 : index
    %27 = vector.load %arg3[%c1_28, %c0_29, %c0_30] : memref<3x8x4xbf16, #tpu.memory_space<vmem>>, vector<1x8x4xbf16>
    %28 = vector.shape_cast %27 : vector<1x8x4xbf16> to vector<8x4xbf16>
    %c0_31 = arith.constant 0 : index
    %c1_32 = arith.constant 1 : index
    %29 = vector.load %arg7[%c0_31, %c1_32] : memref<4x362xbf16, #tpu.memory_space<vmem>>, vector<4x360xbf16>
    %cst_33 = arith.constant dense<0.000000e+00> : vector<8x360xf32>
    %30 = tpu.matmul %28, %29, %cst_33 {dimension_numbers = #tpu.dot_dimension_numbers<[1], [0], [0], [1], [0, 0, 1, 1], [], []>} : vector<8x4xbf16>, vector<4x360xbf16>, vector<8x360xf32> -> vector<8x360xf32>
    %31 = arith.addf %26, %30 : vector<8x360xf32>
    %c2_34 = arith.constant 2 : index
    %c0_35 = arith.constant 0 : index
    %c0_36 = arith.constant 0 : index
    %32 = vector.load %arg3[%c2_34, %c0_35, %c0_36] : memref<3x8x4xbf16, #tpu.memory_space<vmem>>, vector<1x8x4xbf16>
    %33 = vector.shape_cast %32 : vector<1x8x4xbf16> to vector<8x4xbf16>
    %c0_37 = arith.constant 0 : index
    %c2_38 = arith.constant 2 : index
    %34 = vector.load %arg7[%c0_37, %c2_38] : memref<4x362xbf16, #tpu.memory_space<vmem>>, vector<4x360xbf16>
    %cst_39 = arith.constant dense<0.000000e+00> : vector<8x360xf32>
    %35 = tpu.matmul %33, %34, %cst_39 {dimension_numbers = #tpu.dot_dimension_numbers<[1], [0], [0], [1], [0, 0, 1, 1], [], []>} : vector<8x4xbf16>, vector<4x360xbf16>, vector<8x360xf32> -> vector<8x360xf32>
    %36 = arith.addf %31, %35 : vector<8x360xf32>
    %c0_40 = arith.constant 0 : index
    %c0_41 = arith.constant 0 : index
    %37 = vector.load %arg4[%c0_40, %c0_41] : memref<8x1xf32, #tpu.memory_space<vmem>>, vector<8x1xf32>
    %38 = vector.broadcast %37 : vector<8x1xf32> to vector<8x360xf32>
    %39 = arith.mulf %36, %38 : vector<8x360xf32>
    %c0_42 = arith.constant 0 : index
    %c0_43 = arith.constant 0 : index
    %40 = vector.load %arg5[%c0_42, %c0_43] : memref<8x1xf32, #tpu.memory_space<vmem>>, vector<8x1xf32>
    %41 = vector.broadcast %40 : vector<8x1xf32> to vector<8x360xf32>
    %42 = arith.addf %39, %41 : vector<8x360xf32>
    %cst_44 = arith.constant 0.000000e+00 : f32
    %43 = vector.broadcast %cst_44 : f32 to vector<8x360xf32>
    %44 = arith.maximumf %42, %43 : vector<8x360xf32>
    %c0_45 = arith.constant 0 : index
    %c0_46 = arith.constant 0 : index
    %c0_47 = arith.constant 0 : index
    %45 = vector.load %arg6[%c0_45, %c0_46, %c0_47] : memref<1x8x360xf32, #tpu.memory_space<vmem>>, vector<1x8x360xf32>
    %46 = vector.shape_cast %45 : vector<1x8x360xf32> to vector<8x360xf32>
    %47 = vector.shape_cast %44 : vector<8x360xf32> to vector<1x8x360xf32>
    tpu.vector_store %arg6[%c0_45, %c0_46, %c0_47], %47 {strides = array<i32>} : memref<1x8x360xf32, #tpu.memory_space<vmem>>, vector<1x8x360xf32>,
    return
  }
  func.func @transform_0(%arg0: i32) -> (i32, i32, i32) {
    %c0_i32 = arith.constant 0 : i32
    %c0_i32_0 = arith.constant 0 : i32
    %c0_i32_1 = arith.constant 0 : i32
    return %arg0, %c0_i32, %c0_i32_0 : i32, i32, i32
  }
  func.func @transform_1(%arg0: i32) -> (i32, i32, i32) {
    %c0_i32 = arith.constant 0 : i32
    %c0_i32_0 = arith.constant 0 : i32
    %c0_i32_1 = arith.constant 0 : i32
    %c0_i32_2 = arith.constant 0 : i32
    return %c0_i32, %c0_i32_0, %c0_i32_1 : i32, i32, i32
  }
  func.func @transform_2(%arg0: i32) -> (i32, i32, i32) {
    %c0_i32 = arith.constant 0 : i32
    %c0_i32_0 = arith.constant 0 : i32
    %c0_i32_1 = arith.constant 0 : i32
    %c0_i32_2 = arith.constant 0 : i32
    return %c0_i32, %c0_i32_0, %c0_i32_1 : i32, i32, i32
  }
  func.func @transform_3(%arg0: i32) -> (i32, i32) {
    %c0_i32 = arith.constant 0 : i32
    %c0_i32_0 = arith.constant 0 : i32
    %c0_i32_1 = arith.constant 0 : i32
    return %c0_i32, %c0_i32_0 : i32, i32
  }
  func.func @transform_4(%arg0: i32) -> (i32, i32) {
    %c0_i32 = arith.constant 0 : i32
    %c0_i32_0 = arith.constant 0 : i32
    %c0_i32_1 = arith.constant 0 : i32
    return %c0_i32, %c0_i32_0 : i32, i32
  }
  func.func @transform_5(%arg0: i32) -> (i32, i32, i32) {
    %c0_i32 = arith.constant 0 : i32
    %c0_i32_0 = arith.constant 0 : i32
    %c0_i32_1 = arith.constant 0 : i32
    return %arg0, %c0_i32, %c0_i32_0 : i32, i32, i32
  }
}

</mosaic_0001>

<llo_original>
// kernel: fac_conv_forward.3
$region0: #{fac_conv_forward.3}
  #allocation0 [shape = 'u32[]', space=smem, size = 0x4, offset = 0x4, fixed_abs, tag = 'smem constant byte address 0x4 - core index']
  #allocation1 [shape = 'u32[144,128]{1,0:T(1,128)}', space=vmem, size = 0x12000, scoped, tag = 'internal scratch']
  #allocation2 [shape = 'bf16[4,362]{1,0:T(4,128)(2,1)}', space=vmem, size = 0xc00, scoped, tag = 'scratch operand']
  %s0 = inlined_call_operand.vmem [shape: bf16[2,4,360], index: 0, kind: input, shape index: {}]
  %s1 = inlined_call_operand.vmem [shape: bf16[3,4,4], index: 1, kind: input, shape index: {}]
  %s2 = inlined_call_operand.vmem [shape: bf16[3,8,4], index: 2, kind: input, shape index: {}]
  %s3 = inlined_call_operand.vmem [shape: f32[8,1], index: 3, kind: input, shape index: {}]
  %s4 = inlined_call_operand.vmem [shape: f32[8,1], index: 4, kind: input, shape index: {}]
  %s5 = inlined_call_operand.vmem [shape: f32[2,8,360], index: 5, kind: output, shape index: {}]
  %s6 = sld [smem:[#allocation0]]
  $region53: #{fac_conv_forward.3} parent=0
    _
  %s8 = ssub.s32 1, %s6
  %s9 = scalar_select 0, %s8, %s6
  loop: start=0, step=1, limit=4
  $region2: #{fac_conv_forward.3} parent=0 // loop_pre_header
    _
  $region3: #{fac_conv_forward.3} parent=0 // loop_header
    %s11 = sphi 0, %s15
    %p12 = scmp.ge.s32.totalorder %s11, 4
    %s21 = sphi 0, %s23
    %s24 = sphi 0, %s21
    %s25 = sphi 0, %s24
    %s41 = sphi 0, %s25
    %s45 = sphi 0, %s45
    %s47 = sphi 0, %s45
    %s48 = sphi 0, %s47
    %s62 = sphi 0, %s48
    %s66 = sphi 0, %s66
    %s68 = sphi 0, %s66
    %s69 = sphi 0, %s68
    %s83 = sphi 0, %s69
    %s87 = sphi 0, %s87
    %s89 = sphi 0, %s87
    %s90 = sphi 0, %s89
    %s104 = sphi 0, %s90
    %s108 = sphi 0, %s108
    %s110 = sphi 0, %s108
    %s111 = sphi 0, %s110
    %s125 = sphi 0, %s111
    %s131 = sphi 0, %s133
    %s134 = sphi 0, %s131
    %s135 = sphi 0, %s134
    %s151 = sphi 0, %s135
  $region4: #{fac_conv_forward.3} parent=0 // loop_header_branch
    %14 = sbr.rel (%p12) target = $region8
  $region5: #{fac_conv_forward.3} parent=0 // loop_body
    %s16 = ssub.s32 %s11, 1
    %s17 = ssub.s32 %s11, 2
    %s18 = sadd.s32 %s11, 1
    %s19 = ssub.s32 %s11, %s18
    %p20 = scmp.eq.s32.totalorder %s19, 0
    %s22 = sadd.s32 %s21, 1
    %s23 = scalar_select %p20, %s21, %s22
    %p26 = pneg %p20
    %p27 = scmp.eq.s32.totalorder %s11, 1
    %p28 = por %p26, %p27
    %p29 = scmp.ne.s32.totalorder %s21, %s24
    %p30 = scmp.eq.s32.totalorder %s11, 0
    %p31 = por %p29, %p30
    %p32 = scmp.ne.s32.totalorder %s21, %s24
    %p33 = scmp.eq.s32.totalorder %s16, 1
    %p34 = por %p32, %p33
    %p35 = scmp.ne.s32.totalorder %s24, %s25
    %p36 = scmp.eq.s32.totalorder %s16, 0
    %p37 = por %p35, %p36
    %p38 = scmp.ne.s32.totalorder %s24, %s25
    %p39 = scmp.eq.s32.totalorder %s17, 1
    %p40 = por %p38, %p39
    %p42 = scmp.ne.s32.totalorder %s25, %s41
    %p43 = scmp.eq.s32.totalorder %s17, 0
    %p44 = por %p42, %p43
    %s46 = sadd.s32 %s45, 1
    %p49 = scmp.eq.s32.totalorder %s11, 1
    %p50 = scmp.ne.s32.totalorder %s45, %s47
    %p51 = scmp.eq.s32.totalorder %s11, 0
    %p52 = por %p50, %p51
    %p53 = scmp.ne.s32.totalorder %s45, %s47
    %p54 = scmp.eq.s32.totalorder %s16, 1
    %p55 = por %p53, %p54
    %p56 = scmp.ne.s32.totalorder %s47, %s48
    %p57 = scmp.eq.s32.totalorder %s16, 0
    %p58 = por %p56, %p57
    %p59 = scmp.ne.s32.totalorder %s47, %s48
    %p60 = scmp.eq.s32.totalorder %s17, 1
    %p61 = por %p59, %p60
    %p63 = scmp.ne.s32.totalorder %s48, %s62
    %p64 = scmp.eq.s32.totalorder %s17, 0
    %p65 = por %p63, %p64
    %s67 = sadd.s32 %s66, 1
    %p70 = scmp.eq.s32.totalorder %s11, 1
    %p71 = scmp.ne.s32.totalorder %s66, %s68
    %p72 = scmp.eq.s32.totalorder %s11, 0
    %p73 = por %p71, %p72
    %p74 = scmp.ne.s32.totalorder %s66, %s68
    %p75 = scmp.eq.s32.totalorder %s16, 1
    %p76 = por %p74, %p75
    %p77 = scmp.ne.s32.totalorder %s68, %s69
    %p78 = scmp.eq.s32.totalorder %s16, 0
    %p79 = por %p77, %p78
    %p80 = scmp.ne.s32.totalorder %s68, %s69
    %p81 = scmp.eq.s32.totalorder %s17, 1
    %p82 = por %p80, %p81
    %p84 = scmp.ne.s32.totalorder %s69, %s83
    %p85 = scmp.eq.s32.totalorder %s17, 0
    %p86 = por %p84, %p85
    %s88 = sadd.s32 %s87, 1
    %p91 = scmp.eq.s32.totalorder %s11, 1
    %p92 = scmp.ne.s32.totalorder %s87, %s89
    %p93 = scmp.eq.s32.totalorder %s11, 0
    %p94 = por %p92, %p93
    %p95 = scmp.ne.s32.totalorder %s87, %s89
    %p96 = scmp.eq.s32.totalorder %s16, 1
    %p97 = por %p95, %p96
    %p98 = scmp.ne.s32.totalorder %s89, %s90
    %p99 = scmp.eq.s32.totalorder %s16, 0
    %p100 = por %p98, %p99
    %p101 = scmp.ne.s32.totalorder %s89, %s90
    %p102 = scmp.eq.s32.totalorder %s17, 1
    %p103 = por %p101, %p102
    %p105 = scmp.ne.s32.totalorder %s90, %s104
    %p106 = scmp.eq.s32.totalorder %s17, 0
    %p107 = por %p105, %p106
    %s109 = sadd.s32 %s108, 1
    %p112 = scmp.eq.s32.totalorder %s11, 1
    %p113 = scmp.ne.s32.totalorder %s108, %s110
    %p114 = scmp.eq.s32.totalorder %s11, 0
    %p115 = por %p113, %p114
    %p116 = scmp.ne.s32.totalorder %s108, %s110
    %p117 = scmp.eq.s32.totalorder %s16, 1
    %p118 = por %p116, %p117
    %p119 = scmp.ne.s32.totalorder %s110, %s111
    %p120 = scmp.eq.s32.totalorder %s16, 0
    %p121 = por %p119, %p120
    %p122 = scmp.ne.s32.totalorder %s110, %s111
    %p123 = scmp.eq.s32.totalorder %s17, 1
    %p124 = por %p122, %p123
    %p126 = scmp.ne.s32.totalorder %s111, %s125
    %p127 = scmp.eq.s32.totalorder %s17, 0
    %p128 = por %p126, %p127
    %s129 = ssub.s32 %s11, %s18
    %p130 = scmp.eq.s32.totalorder %s129, 0
    %s132 = sadd.s32 %s131, 1
    %s133 = scalar_select %p130, %s131, %s132
    %p136 = pneg %p130
    %p137 = scmp.eq.s32.totalorder %s11, 1
    %p138 = por %p136, %p137
    %p139 = scmp.ne.s32.totalorder %s131, %s134
    %p140 = scmp.eq.s32.totalorder %s11, 0
    %p141 = por %p139, %p140
    %p142 = scmp.ne.s32.totalorder %s131, %s134
    %p143 = scmp.eq.s32.totalorder %s16, 1
    %p144 = por %p142, %p143
    %p145 = scmp.ne.s32.totalorder %s134, %s135
    %p146 = scmp.eq.s32.totalorder %s16, 0
    %p147 = por %p145, %p146
    %p148 = scmp.ne.s32.totalorder %s134, %s135
    %p149 = scmp.eq.s32.totalorder %s17, 1
    %p150 = por %p148, %p149
    %p152 = scmp.ne.s32.totalorder %s135, %s151
    %p153 = scmp.eq.s32.totalorder %s17, 0
    %p154 = por %p152, %p153
    %p155 = scmp.le.s32.totalorder 1, %s11
    %p156 = scmp.lt.s32.totalorder %s11, 3
    %p157 = pnand %p155, %p156
    %p158 = pneg %p157
    // Predicated region
    $region9: #{fac_conv_forward.3} parent=5 // pred_check
      _
    $region10: #{fac_conv_forward.3} parent=5 // pred_check_branch
      %160 = sbr.rel (%p157) target = $region12
    $region11: #{fac_conv_forward.3} parent=5 // pred_region
      %s161 = ssub.s32 %s11, 1
      // Predicated region
      $region13: #{fac_conv_forward.3} parent=11 // pred_check
        %p162 = pneg %p58
      $region14: #{fac_conv_forward.3} parent=11 // pred_check_branch
        %164 = sbr.rel (%p162) target = $region16
      $region15: #{fac_conv_forward.3} parent=11 // pred_region
        _
      $region16: #{fac_conv_forward.3} parent=11 // pred_fallthru
        _
      // Predicated region
      $region17: #{fac_conv_forward.3} parent=11 // pred_check
        %p165 = pneg %p79
      $region18: #{fac_conv_forward.3} parent=11 // pred_check_branch
        %167 = sbr.rel (%p165) target = $region20
      $region19: #{fac_conv_forward.3} parent=11 // pred_region
        _
      $region20: #{fac_conv_forward.3} parent=11 // pred_fallthru
        _
      // Predicated region
      $region21: #{fac_conv_forward.3} parent=11 // pred_check
        %p168 = pneg %p100
      $region22: #{fac_conv_forward.3} parent=11 // pred_check_branch
        %170 = sbr.rel (%p168) target = $region24
      $region23: #{fac_conv_forward.3} parent=11 // pred_region
        _
      $region24: #{fac_conv_forward.3} parent=11 // pred_fallthru
        _
      // Predicated region
      $region25: #{fac_conv_forward.3} parent=11 // pred_check
        %p171 = pneg %p121
      $region26: #{fac_conv_forward.3} parent=11 // pred_check_branch
        %173 = sbr.rel (%p171) target = $region28
      $region27: #{fac_conv_forward.3} parent=11 // pred_region
        _
      $region28: #{fac_conv_forward.3} parent=11 // pred_fallthru
        _
    $region12: #{fac_conv_forward.3} parent=5 // pred_fallthru
      _
    %p174 = scmp.lt.s32.totalorder %s11, 2
    // Predicated region
    $region29: #{fac_conv_forward.3} parent=5 // pred_check
      %p175 = pneg %p174
    $region30: #{fac_conv_forward.3} parent=5 // pred_check_branch
      %177 = sbr.rel (%p175) target = $region32
    $region31: #{fac_conv_forward.3} parent=5 // pred_region
      // Predicated region
      $region33: #{fac_conv_forward.3} parent=31 // pred_check
        %p178 = pneg %p31
      $region34: #{fac_conv_forward.3} parent=31 // pred_check_branch
        %180 = sbr.rel (%p178) target = $region36
      $region35: #{fac_conv_forward.3} parent=31 // pred_region
        %p181 = scmp.lt.s32.totalorder %s11, 1
        %s182 = scalar_select %p181, %s11, 1
        %s183 = smul.addr %s182, 3
        %s184 = smul.addr %s183, 2
        %s185 = scalar_lea.vmem %s0, %s184
      $region36: #{fac_conv_forward.3} parent=31 // pred_fallthru
        _
    $region32: #{fac_conv_forward.3} parent=5 // pred_fallthru
      _
    %p186 = scmp.le.s32.totalorder 1, %s11
    %p187 = scmp.lt.s32.totalorder %s11, 3
    %p188 = pnand %p186, %p187
    %p189 = pneg %p188
    // Predicated region
    $region37: #{fac_conv_forward.3} parent=5 // pred_check
      _
    $region38: #{fac_conv_forward.3} parent=5 // pred_check_branch
      %191 = sbr.rel (%p188) target = $region40
    $region39: #{fac_conv_forward.3} parent=5 // pred_region
      %s192 = ssub.s32 %s11, 1
      %p193 = scmp.lt.s32.totalorder %s16, 1
      %s194 = scalar_select %p193, %s16, 1
      %s195 = smul.addr %s194, 3
      %s196 = smul.addr %s195, 2
      %s197 = scalar_lea.vmem %s0, %s196
      %p198 = pneg %p37
      %p199 = pneg %p34
      %p200 = pneg %p58
      %p201 = pneg %p55
      %p202 = pneg %p79
      %p203 = pneg %p76
      %p204 = pneg %p100
      %p205 = pneg %p97
      %p206 = pneg %p121
      %p207 = pneg %p118
      %p208 = pneg %p147
      %p209 = pneg %p144
      %p210 = scmp.lt.s32.totalorder %s16, 1
      %s211 = scalar_select %p210, %s16, 1
      %s212 = smul.addr %s211, 3
      %s213 = smul.addr %s212, 8
      %s214 = scalar_lea.vmem %s5, %s213
      %p215 = scmp.lt.s32.totalorder %s16, 1
      %s216 = scalar_select %p215, %s16, 1
      %s217 = smul.addr %s216, 3
      %s218 = smul.addr %s217, 2
      %s219 = scalar_lea.vmem %s0, %s218
      %p220 = scmp.lt.s32.totalorder %s16, 1
      %s221 = scalar_select %p220, %s16, 1
      %s222 = smul.addr %s221, 3
      %s223 = smul.addr %s222, 8
      %s224 = scalar_lea.vmem %s5, %s223
      %v226 = vld [vmem:[%s1] sm:$0x3]
      %v227 = vld [vmem:[%s219] sm:$0x3f]
      %s228 = scalar_lea.vmem %s1, 2
      %v229 = vld [vmem:[%s228] sm:$0x3]
      %v231 = vcombine.high %v227, %v227
      %v233 = vunpack.c.l.s4 1983009808
      %v234 = vunpack.c.0.s8 %v233
      %v235 = vlaneseq
      %v236 = vshrl.u32 %v235, 7
      %v237 = vsub.s32 %v234, %v236
      %v238 = vrot.slane %v227, %v237
      %v240 = vunpack.c.l.s4 1983009808
      %v241 = vunpack.c.0.s8 %v240
      %v242 = vlaneseq
      %v243 = vshrl.u32 %v242, 7
      %v244 = vsub.s32 %v241, %v243
      %v245 = vrot.slane %v231, %v244
      %v246 = vcombine.high %v238, %v238
      %247 = vrot.lane.b32.xlu0 %v238, 108
      %v248 = vpop.permute.xlu0 %247
      %249 = vrot.lane.b32.xlu0 %v246, 108
      %v250 = vpop.permute.xlu0 %249
      %251 = vrot.lane.b32.xlu0 %v245, 108
      %v252 = vpop.permute.xlu0 %251
      %vm253 = vcmask 883712
      %v254 = vsel %vm253, %v248, %v250
      %v255 = vsel %vm253, %v250, %v252
      %vm256 = vcmask 31744
      %v258 = vsel %vm256, %v229, 0
      %vm260 = vcmask 1041408
      %v262 = vsel %vm260, %v254, 0
      %v265 = vsel %vm260, %v255, 0
      %v268 = vsel %vm260, %v252, 0
      %270 = vmatprep.subr.bf16.mxu0 %v265
      %271 = vmatpush1.bf16.msra.mxu0 %v262
      %272 = vmatprep.subr.bf16.mxu0 0
      %273 = vmatpush1.bf16.msra.mxu0 0
      %274 = vmatprep.subr.bf16.mxu0 0
      %275 = vmatpush1.bf16.msra.mxu0 0
      %276 = vmatprep.subr.bf16.mxu0 0
      %277 = vmatpush1.bf16.msra.mxu0 0
      %278 = vmatprep.subr.bf16.mxu0 0
      %279 = vmatpush1.bf16.msra.mxu0 0
      %280 = vmatprep.subr.bf16.mxu0 0
      %281 = vmatpush1.bf16.msra.mxu0 0
      %282 = vmatprep.subr.bf16.mxu0 0
      %283 = vmatpush1.bf16.msra.mxu0 0
      %284 = vmatprep.subr.bf16.mxu0 0
      %285 = vmatpush1.bf16.msra.mxu0 0
      %286 = vmatprep.subr.bf16.mxu0 0
      %287 = vmatpush1.bf16.msra.mxu0 0
      %288 = vmatprep.subr.bf16.mxu0 0
      %289 = vmatpush1.bf16.msra.mxu0 0
      %290 = vmatprep.subr.bf16.mxu0 0
      %291 = vmatpush1.bf16.msra.mxu0 0
      %292 = vmatprep.subr.bf16.mxu0 0
      %293 = vmatpush1.bf16.msra.mxu0 0
      %294 = vmatprep.subr.bf16.mxu0 0
      %295 = vmatpush1.bf16.msra.mxu0 0
      %296 = vmatprep.subr.bf16.mxu0 0
      %297 = vmatpush1.bf16.msra.mxu0 0
      %298 = vmatprep.subr.bf16.mxu0 0
      %299 = vmatpush1.bf16.msra.mxu0 0
      %300 = vmatprep.subr.bf16.mxu0 0
      %301 = vmatpush1.bf16.msra.mxu0 0
      %302 = vmatprep.mubr.bf16.mxu0 0
      %303 = vmatmul.mubr.bf16.gmra.mrb[0].mxu0 %v258
      %v304 = vpop.f32.mrb[0].mxu0
      %v305 = vadd.f32 0.0, %v304
      %v306 = vpop.f32.mrb[0].mxu0
      %v307 = vadd.f32 0.0, %v306
      %v308 = vpop.f32.mrb[0].mxu0
      %v309 = vpop.f32.mrb[0].mxu0
      %310 = vdwg.mxu0
      %311 = vmatprep.subr.bf16.mxu0 0
      %312 = vmatpush1.bf16.msra.mxu0 %v268
      %313 = vmatprep.subr.bf16.mxu0 0
      %314 = vmatpush1.bf16.msra.mxu0 0
      %315 = vmatprep.subr.bf16.mxu0 0
      %316 = vmatpush1.bf16.msra.mxu0 0
      %317 = vmatprep.subr.bf16.mxu0 0
      %318 = vmatpush1.bf16.msra.mxu0 0
      %319 = vmatprep.subr.bf16.mxu0 0
      %320 = vmatpush1.bf16.msra.mxu0 0
      %321 = vmatprep.subr.bf16.mxu0 0
      %322 = vmatpush1.bf16.msra.mxu0 0
      %323 = vmatprep.subr.bf16.mxu0 0
      %324 = vmatpush1.bf16.msra.mxu0 0
      %325 = vmatprep.subr.bf16.mxu0 0
      %326 = vmatpush1.bf16.msra.mxu0 0
      %327 = vmatprep.subr.bf16.mxu0 0
      %328 = vmatpush1.bf16.msra.mxu0 0
      %329 = vmatprep.subr.bf16.mxu0 0
      %330 = vmatpush1.bf16.msra.mxu0 0
      %331 = vmatprep.subr.bf16.mxu0 0
      %332 = vmatpush1.bf16.msra.mxu0 0
      %333 = vmatprep.subr.bf16.mxu0 0
      %334 = vmatpush1.bf16.msra.mxu0 0
      %335 = vmatprep.subr.bf16.mxu0 0
      %336 = vmatpush1.bf16.msra.mxu0 0
      %337 = vmatprep.subr.bf16.mxu0 0
      %338 = vmatpush1.bf16.msra.mxu0 0
      %339 = vmatprep.subr.bf16.mxu0 0
      %340 = vmatpush1.bf16.msra.mxu0 0
      %341 = vmatprep.subr.bf16.mxu0 0
      %342 = vmatpush1.bf16.msra.mxu0 0
      %343 = vmatprep.mubr.bf16.mxu0 0
      %344 = vmatmul.mubr.bf16.gmra.mrb[0].mxu0 %v258
      %v345 = vpop.f32.mrb[0].mxu0
      %v346 = vadd.f32 0.0, %v345
      %v347 = vpop.f32.mrb[0].mxu0
      %v348 = vpop.f32.mrb[0].mxu0
      %v349 = vpop.f32.mrb[0].mxu0
      %350 = vdwg.mxu0
      %v352 = vsel %vm256, %v226, 0
      %v355 = vsel %vm260, %v238, 0
      %v358 = vsel %vm260, %v246, 0
      %v361 = vsel %vm260, %v245, 0
      %363 = vmatprep.subr.bf16.mxu0 %v358
      %364 = vmatpush1.bf16.msra.mxu0 %v355
      %365 = vmatprep.subr.bf16.mxu0 0
      %366 = vmatpush1.bf16.msra.mxu0 0
      %367 = vmatprep.subr.bf16.mxu0 0
      %368 = vmatpush1.bf16.msra.mxu0 0
      %369 = vmatprep.subr.bf16.mxu0 0
      %370 = vmatpush1.bf16.msra.mxu0 0
      %371 = vmatprep.subr.bf16.mxu0 0
      %372 = vmatpush1.bf16.msra.mxu0 0
      %373 = vmatprep.subr.bf16.mxu0 0
      %374 = vmatpush1.bf16.msra.mxu0 0
      %375 = vmatprep.subr.bf16.mxu0 0
      %376 = vmatpush1.bf16.msra.mxu0 0
      %377 = vmatprep.subr.bf16.mxu0 0
      %378 = vmatpush1.bf16.msra.mxu0 0
      %379 = vmatprep.subr.bf16.mxu0 0
      %380 = vmatpush1.bf16.msra.mxu0 0
      %381 = vmatprep.subr.bf16.mxu0 0
      %382 = vmatpush1.bf16.msra.mxu0 0
      %383 = vmatprep.subr.bf16.mxu0 0
      %384 = vmatpush1.bf16.msra.mxu0 0
      %385 = vmatprep.subr.bf16.mxu0 0
      %386 = vmatpush1.bf16.msra.mxu0 0
      %387 = vmatprep.subr.bf16.mxu0 0
      %388 = vmatpush1.bf16.msra.mxu0 0
      %389 = vmatprep.subr.bf16.mxu0 0
      %390 = vmatpush1.bf16.msra.mxu0 0
      %391 = vmatprep.subr.bf16.mxu0 0
      %392 = vmatpush1.bf16.msra.mxu0 0
      %393 = vmatprep.subr.bf16.mxu0 0
      %394 = vmatpush1.bf16.msra.mxu0 0
      %395 = vmatprep.mubr.bf16.mxu0 0
      %396 = vmatmul.mubr.bf16.gmra.mrb[0].mxu0 %v352
      %v397 = vpop.f32.mrb[0].mxu0
      %v398 = vadd.f32 %v305, %v397
      %v399 = vpop.f32.mrb[0].mxu0
      %v400 = vadd.f32 %v307, %v399
      %v401 = vpop.f32.mrb[0].mxu0
      %v402 = vpop.f32.mrb[0].mxu0
      %403 = vdwg.mxu0
      %404 = vmatprep.subr.bf16.mxu0 0
      %405 = vmatpush1.bf16.msra.mxu0 %v361
      %406 = vmatprep.subr.bf16.mxu0 0
      %407 = vmatpush1.bf16.msra.mxu0 0
      %408 = vmatprep.subr.bf16.mxu0 0
      %409 = vmatpush1.bf16.msra.mxu0 0
      %410 = vmatprep.subr.bf16.mxu0 0
      %411 = vmatpush1.bf16.msra.mxu0 0
      %412 = vmatprep.subr.bf16.mxu0 0
      %413 = vmatpush1.bf16.msra.mxu0 0
      %414 = vmatprep.subr.bf16.mxu0 0
      %415 = vmatpush1.bf16.msra.mxu0 0
      %416 = vmatprep.subr.bf16.mxu0 0
      %417 = vmatpush1.bf16.msra.mxu0 0
      %418 = vmatprep.subr.bf16.mxu0 0
      %419 = vmatpush1.bf16.msra.mxu0 0
      %420 = vmatprep.subr.bf16.mxu0 0
      %421 = vmatpush1.bf16.msra.mxu0 0
      %422 = vmatprep.subr.bf16.mxu0 0
      %423 = vmatpush1.bf16.msra.mxu0 0
      %424 = vmatprep.subr.bf16.mxu0 0
      %425 = vmatpush1.bf16.msra.mxu0 0
      %426 = vmatprep.subr.bf16.mxu0 0
      %427 = vmatpush1.bf16.msra.mxu0 0
      %428 = vmatprep.subr.bf16.mxu0 0
      %429 = vmatpush1.bf16.msra.mxu0 0
      %430 = vmatprep.subr.bf16.mxu0 0
      %431 = vmatpush1.bf16.msra.mxu0 0
      %432 = vmatprep.subr.bf16.mxu0 0
      %433 = vmatpush1.bf16.msra.mxu0 0
      %434 = vmatprep.subr.bf16.mxu0 0
      %435 = vmatpush1.bf16.msra.mxu0 0
      %436 = vmatprep.mubr.bf16.mxu0 0
      %437 = vmatmul.mubr.bf16.gmra.mrb[0].mxu0 %v352
      %v438 = vpop.f32.mrb[0].mxu0
      %v439 = vadd.f32 %v346, %v438
      %v440 = vpop.f32.mrb[0].mxu0
      %v441 = vpop.f32.mrb[0].mxu0
      %v442 = vpop.f32.mrb[0].mxu0
      %443 = vdwg.mxu0
      %s444 = scalar_lea.vmem %s1, 4
      %v445 = vld [vmem:[%s444] sm:$0x3]
      %v446 = vld [vmem:[%s219] sm:$0x3f]
      %v448 = vcombine.high %v446, %v446
      %v450 = vunpack.c.l.s4 1983009808
      %v451 = vunpack.c.0.s8 %v450
      %v452 = vlaneseq
      %v453 = vshrl.u32 %v452, 7
      %v454 = vsub.s32 %v451, %v453
      %v455 = vrot.slane %v446, %v454
      %v457 = vunpack.c.l.s4 1983009808
      %v458 = vunpack.c.0.s8 %v457
      %v459 = vlaneseq
      %v460 = vshrl.u32 %v459, 7
      %v461 = vsub.s32 %v458, %v460
      %v462 = vrot.slane %v448, %v461
      %v463 = vcombine.high %v455, %v455
      %464 = vrot.lane.b32.xlu0 %v455, 88
      %v465 = vpop.permute.xlu0 %464
      %466 = vrot.lane.b32.xlu0 %v463, 88
      %v467 = vpop.permute.xlu0 %466
      %468 = vrot.lane.b32.xlu0 %v462, 88
      %v469 = vpop.permute.xlu0 %468
      %vm470 = vcmask 719872
      %v471 = vsel %vm470, %v465, %v467
      %v472 = vsel %vm470, %v467, %v469
      %v474 = vsel %vm256, %v445, 0
      %v477 = vsel %vm260, %v471, 0
      %v480 = vsel %vm260, %v472, 0
      %v483 = vsel %vm260, %v469, 0
      %485 = vmatprep.subr.bf16.mxu0 %v480
      %486 = vmatpush1.bf16.msra.mxu0 %v477
      %487 = vmatprep.subr.bf16.mxu0 0
      %488 = vmatpush1.bf16.msra.mxu0 0
      %489 = vmatprep.subr.bf16.mxu0 0
      %490 = vmatpush1.bf16.msra.mxu0 0
      %491 = vmatprep.subr.bf16.mxu0 0
      %492 = vmatpush1.bf16.msra.mxu0 0
      %493 = vmatprep.subr.bf16.mxu0 0
      %494 = vmatpush1.bf16.msra.mxu0 0
      %495 = vmatprep.subr.bf16.mxu0 0
      %496 = vmatpush1.bf16.msra.mxu0 0
      %497 = vmatprep.subr.bf16.mxu0 0
      %498 = vmatpush1.bf16.msra.mxu0 0
      %499 = vmatprep.subr.bf16.mxu0 0
      %500 = vmatpush1.bf16.msra.mxu0 0
      %501 = vmatprep.subr.bf16.mxu0 0
      %502 = vmatpush1.bf16.msra.mxu0 0
      %503 = vmatprep.subr.bf16.mxu0 0
      %504 = vmatpush1.bf16.msra.mxu0 0
      %505 = vmatprep.subr.bf16.mxu0 0
      %506 = vmatpush1.bf16.msra.mxu0 0
      %507 = vmatprep.subr.bf16.mxu0 0
      %508 = vmatpush1.bf16.msra.mxu0 0
      %509 = vmatprep.subr.bf16.mxu0 0
      %510 = vmatpush1.bf16.msra.mxu0 0
      %511 = vmatprep.subr.bf16.mxu0 0
      %512 = vmatpush1.bf16.msra.mxu0 0
      %513 = vmatprep.subr.bf16.mxu0 0
      %514 = vmatpush1.bf16.msra.mxu0 0
      %515 = vmatprep.subr.bf16.mxu0 0
      %516 = vmatpush1.bf16.msra.mxu0 0
      %517 = vmatprep.mubr.bf16.mxu0 0
      %518 = vmatmul.mubr.bf16.gmra.mrb[0].mxu0 %v474
      %v519 = vpop.f32.mrb[0].mxu0
      %v520 = vadd.f32 0.0, %v519
      %v521 = vpop.f32.mrb[0].mxu0
      %v522 = vadd.f32 0.0, %v521
      %v523 = vpop.f32.mrb[0].mxu0
      %v524 = vpop.f32.mrb[0].mxu0
      %525 = vdwg.mxu0
      %526 = vmatprep.subr.bf16.mxu0 0
      %527 = vmatpush1.bf16.msra.mxu0 %v483
      %528 = vmatprep.subr.bf16.mxu0 0
      %529 = vmatpush1.bf16.msra.mxu0 0
      %530 = vmatprep.subr.bf16.mxu0 0
      %531 = vmatpush1.bf16.msra.mxu0 0
      %532 = vmatprep.subr.bf16.mxu0 0
      %533 = vmatpush1.bf16.msra.mxu0 0
      %534 = vmatprep.subr.bf16.mxu0 0
      %535 = vmatpush1.bf16.msra.mxu0 0
      %536 = vmatprep.subr.bf16.mxu0 0
      %537 = vmatpush1.bf16.msra.mxu0 0
      %538 = vmatprep.subr.bf16.mxu0 0
      %539 = vmatpush1.bf16.msra.mxu0 0
      %540 = vmatprep.subr.bf16.mxu0 0
      %541 = vmatpush1.bf16.msra.mxu0 0
      %542 = vmatprep.subr.bf16.mxu0 0
      %543 = vmatpush1.bf16.msra.mxu0 0
      %544 = vmatprep.subr.bf16.mxu0 0
      %545 = vmatpush1.bf16.msra.mxu0 0
      %546 = vmatprep.subr.bf16.mxu0 0
      %547 = vmatpush1.bf16.msra.mxu0 0
      %548 = vmatprep.subr.bf16.mxu0 0
      %549 = vmatpush1.bf16.msra.mxu0 0
      %550 = vmatprep.subr.bf16.mxu0 0
      %551 = vmatpush1.bf16.msra.mxu0 0
      %552 = vmatprep.subr.bf16.mxu0 0
      %553 = vmatpush1.bf16.msra.mxu0 0
      %554 = vmatprep.subr.bf16.mxu0 0
      %555 = vmatpush1.bf16.msra.mxu0 0
      %556 = vmatprep.subr.bf16.mxu0 0
      %557 = vmatpush1.bf16.msra.mxu0 0
      %558 = vmatprep.mubr.bf16.mxu0 0
      %559 = vmatmul.mubr.bf16.gmra.mrb[0].mxu0 %v474
      %v560 = vpop.f32.mrb[0].mxu0
      %v561 = vadd.f32 0.0, %v560
      %v562 = vpop.f32.mrb[0].mxu0
      %v563 = vpop.f32.mrb[0].mxu0
      %v564 = vpop.f32.mrb[0].mxu0
      %565 = vdwg.mxu0
      %v566 = vadd.f32 %v398, %v520
      %v567 = vadd.f32 %v400, %v522
      %v568 = vadd.f32 %v439, %v561
      %vm569 = vcmask 156672
      %570 = vst.msk [vmem:[#allocation2] sm:$0x3] %vm569, 0
      %vm571 = vcmask 861856
      %572 = vst.msk [vmem:[#allocation2 + $0x4] sm:$0x3] %vm571, 0
      %v573 = vpack.c.bf16 %v566, %v566
      %v574 = vpack.c.bf16 %v567, %v567
      %v575 = vpack.c.bf16 %v568, %v568
      %v579 = vcombine.low %v573, %v574
      %v581 = vunpack.c.l.s4 1983009808
      %v582 = vunpack.c.0.s8 %v581
      %v583 = vlaneseq
      %v584 = vshrl.u32 %v583, 7
      %v585 = vsub.s32 %v582, %v584
      %v586 = vrot.slane %v579, %v585
      %v588 = vunpack.c.l.s4 1983009808
      %v589 = vunpack.c.0.s8 %v588
      %v590 = vlaneseq
      %v591 = vshrl.u32 %v590, 7
      %v592 = vsub.s32 %v589, %v591
      %v593 = vrot.slane %v575, %v592
      %v594 = vcombine.low %v586, %v593
      %595 = vrot.lane.b32.xlu0 %v594, 20
      %v596 = vpop.permute.xlu0 %595
      %v597 = vrot.slane %v596, 6
      %vm598 = vcmask 162816
      %v599 = vsel %vm598, %v597, %v596
      %vm601 = vcmask 1041568
      %vm602 = vcmask 1043458
      %vm603 = vmor %vm602, %vm601
      %vm604 = vcmask 685060
      %vm605 = vmor %vm604, %vm603
      %606 = vst.msk [vmem:[#allocation2] sm:$0x3f] %vm605, %v599
      %v607 = vld [vmem:[%s2] sm:$0xf]
      %v608 = vld [vmem:[#allocation2] sm:$0x3f]
      %s609 = scalar_lea.vmem %s2, 4
      %v610 = vld [vmem:[%s609] sm:$0xf]
      %v612 = vcombine.high %v608, %v608
      %v614 = vunpack.c.l.s4 1983009808
      %v615 = vunpack.c.0.s8 %v614
      %v616 = vlaneseq
      %v617 = vshrl.u32 %v616, 7
      %v618 = vsub.s32 %v615, %v617
      %v619 = vrot.slane %v608, %v618
      %v621 = vunpack.c.l.s4 1983009808
      %v622 = vunpack.c.0.s8 %v621
      %v623 = vlaneseq
      %v624 = vshrl.u32 %v623, 7
      %v625 = vsub.s32 %v622, %v624
      %v626 = vrot.slane %v612, %v625
      %v627 = vcombine.high %v619, %v619
      %628 = vrot.lane.b32.xlu0 %v619, 127
      %v629 = vpop.permute.xlu0 %628
      %630 = vrot.lane.b32.xlu0 %v627, 127
      %v631 = vpop.permute.xlu0 %630
      %632 = vrot.lane.b32.xlu0 %v626, 127
      %v633 = vpop.permute.xlu0 %632
      %vm634 = vcmask 1039360
      %v635 = vsel %vm634, %v629, %v631
      %v636 = vsel %vm634, %v631, %v633
      %v638 = vsel %vm256, %v610, 0
      %v641 = vsel %vm260, %v635, 0
      %v644 = vsel %vm260, %v636, 0
      %v647 = vsel %vm260, %v633, 0
      %649 = vmatprep.subr.bf16.mxu0 %v644
      %650 = vmatpush1.bf16.msra.mxu0 %v641
      %651 = vmatprep.subr.bf16.mxu0 0
      %652 = vmatpush1.bf16.msra.mxu0 0
      %653 = vmatprep.subr.bf16.mxu0 0
      %654 = vmatpush1.bf16.msra.mxu0 0
      %655 = vmatprep.subr.bf16.mxu0 0
      %656 = vmatpush1.bf16.msra.mxu0 0
      %657 = vmatprep.subr.bf16.mxu0 0
      %658 = vmatpush1.bf16.msra.mxu0 0
      %659 = vmatprep.subr.bf16.mxu0 0
      %660 = vmatpush1.bf16.msra.mxu0 0
      %661 = vmatprep.subr.bf16.mxu0 0
      %662 = vmatpush1.bf16.msra.mxu0 0
      %663 = vmatprep.subr.bf16.mxu0 0
      %664 = vmatpush1.bf16.msra.mxu0 0
      %665 = vmatprep.subr.bf16.mxu0 0
      %666 = vmatpush1.bf16.msra.mxu0 0
      %667 = vmatprep.subr.bf16.mxu0 0
      %668 = vmatpush1.bf16.msra.mxu0 0
      %669 = vmatprep.subr.bf16.mxu0 0
      %670 = vmatpush1.bf16.msra.mxu0 0
      %671 = vmatprep.subr.bf16.mxu0 0
      %672 = vmatpush1.bf16.msra.mxu0 0
      %673 = vmatprep.subr.bf16.mxu0 0
      %674 = vmatpush1.bf16.msra.mxu0 0
      %675 = vmatprep.subr.bf16.mxu0 0
      %676 = vmatpush1.bf16.msra.mxu0 0
      %677 = vmatprep.subr.bf16.mxu0 0
      %678 = vmatpush1.bf16.msra.mxu0 0
      %679 = vmatprep.subr.bf16.mxu0 0
      %680 = vmatpush1.bf16.msra.mxu0 0
      %681 = vmatprep.mubr.bf16.mxu0 0
      %682 = vmatmul.mubr.bf16.gmra.mrb[0].mxu0 %v638
      %v683 = vpop.f32.mrb[0].mxu0
      %v684 = vadd.f32 0.0, %v683
      %v685 = vpop.f32.mrb[0].mxu0
      %v686 = vadd.f32 0.0, %v685
      %v687 = vpop.f32.mrb[0].mxu0
      %v688 = vpop.f32.mrb[0].mxu0
      %689 = vdwg.mxu0
      %690 = vmatprep.subr.bf16.mxu0 0
      %691 = vmatpush1.bf16.msra.mxu0 %v647
      %692 = vmatprep.subr.bf16.mxu0 0
      %693 = vmatpush1.bf16.msra.mxu0 0
      %694 = vmatprep.subr.bf16.mxu0 0
      %695 = vmatpush1.bf16.msra.mxu0 0
      %696 = vmatprep.subr.bf16.mxu0 0
      %697 = vmatpush1.bf16.msra.mxu0 0
      %698 = vmatprep.subr.bf16.mxu0 0
      %699 = vmatpush1.bf16.msra.mxu0 0
      %700 = vmatprep.subr.bf16.mxu0 0
      %701 = vmatpush1.bf16.msra.mxu0 0
      %702 = vmatprep.subr.bf16.mxu0 0
      %703 = vmatpush1.bf16.msra.mxu0 0
      %704 = vmatprep.subr.bf16.mxu0 0
      %705 = vmatpush1.bf16.msra.mxu0 0
      %706 = vmatprep.subr.bf16.mxu0 0
      %707 = vmatpush1.bf16.msra.mxu0 0
      %708 = vmatprep.subr.bf16.mxu0 0
      %709 = vmatpush1.bf16.msra.mxu0 0
      %710 = vmatprep.subr.bf16.mxu0 0
      %711 = vmatpush1.bf16.msra.mxu0 0
      %712 = vmatprep.subr.bf16.mxu0 0
      %713 = vmatpush1.bf16.msra.mxu0 0
      %714 = vmatprep.subr.bf16.mxu0 0
      %715 = vmatpush1.bf16.msra.mxu0 0
      %716 = vmatprep.subr.bf16.mxu0 0
      %717 = vmatpush1.bf16.msra.mxu0 0
      %718 = vmatprep.subr.bf16.mxu0 0
      %719 = vmatpush1.bf16.msra.mxu0 0
      %720 = vmatprep.subr.bf16.mxu0 0
      %721 = vmatpush1.bf16.msra.mxu0 0
      %722 = vmatprep.mubr.bf16.mxu0 0
      %723 = vmatmul.mubr.bf16.gmra.mrb[0].mxu0 %v638
      %v724 = vpop.f32.mrb[0].mxu0
      %v725 = vadd.f32 0.0, %v724
      %v726 = vpop.f32.mrb[0].mxu0
      %v727 = vpop.f32.mrb[0].mxu0
      %v728 = vpop.f32.mrb[0].mxu0
      %729 = vdwg.mxu0
      %v731 = vsel %vm256, %v607, 0
      %v734 = vsel %vm260, %v619, 0
      %v737 = vsel %vm260, %v627, 0
      %v740 = vsel %vm260, %v626, 0
      %742 = vmatprep.subr.bf16.mxu0 %v737
      %743 = vmatpush1.bf16.msra.mxu0 %v734
      %744 = vmatprep.subr.bf16.mxu0 0
      %745 = vmatpush1.bf16.msra.mxu0 0
      %746 = vmatprep.subr.bf16.mxu0 0
      %747 = vmatpush1.bf16.msra.mxu0 0
      %748 = vmatprep.subr.bf16.mxu0 0
      %749 = vmatpush1.bf16.msra.mxu0 0
      %750 = vmatprep.subr.bf16.mxu0 0
      %751 = vmatpush1.bf16.msra.mxu0 0
      %752 = vmatprep.subr.bf16.mxu0 0
      %753 = vmatpush1.bf16.msra.mxu0 0
      %754 = vmatprep.subr.bf16.mxu0 0
      %755 = vmatpush1.bf16.msra.mxu0 0
      %756 = vmatprep.subr.bf16.mxu0 0
      %757 = vmatpush1.bf16.msra.mxu0 0
      %758 = vmatprep.subr.bf16.mxu0 0
      %759 = vmatpush1.bf16.msra.mxu0 0
      %760 = vmatprep.subr.bf16.mxu0 0
      %761 = vmatpush1.bf16.msra.mxu0 0
      %762 = vmatprep.subr.bf16.mxu0 0
      %763 = vmatpush1.bf16.msra.mxu0 0
      %764 = vmatprep.subr.bf16.mxu0 0
      %765 = vmatpush1.bf16.msra.mxu0 0
      %766 = vmatprep.subr.bf16.mxu0 0
      %767 = vmatpush1.bf16.msra.mxu0 0
      %768 = vmatprep.subr.bf16.mxu0 0
      %769 = vmatpush1.bf16.msra.mxu0 0
      %770 = vmatprep.subr.bf16.mxu0 0
      %771 = vmatpush1.bf16.msra.mxu0 0
      %772 = vmatprep.subr.bf16.mxu0 0
      %773 = vmatpush1.bf16.msra.mxu0 0
      %774 = vmatprep.mubr.bf16.mxu0 0
      %775 = vmatmul.mubr.bf16.gmra.mrb[0].mxu0 %v731
      %v776 = vpop.f32.mrb[0].mxu0
      %v777 = vadd.f32 %v684, %v776
      %v778 = vpop.f32.mrb[0].mxu0
      %v779 = vadd.f32 %v686, %v778
      %v780 = vpop.f32.mrb[0].mxu0
      %v781 = vpop.f32.mrb[0].mxu0
      %782 = vdwg.mxu0
      %783 = vmatprep.subr.bf16.mxu0 0
      %784 = vmatpush1.bf16.msra.mxu0 %v740
      %785 = vmatprep.subr.bf16.mxu0 0
      %786 = vmatpush1.bf16.msra.mxu0 0
      %787 = vmatprep.subr.bf16.mxu0 0
      %788 = vmatpush1.bf16.msra.mxu0 0
      %789 = vmatprep.subr.bf16.mxu0 0
      %790 = vmatpush1.bf16.msra.mxu0 0
      %791 = vmatprep.subr.bf16.mxu0 0
      %792 = vmatpush1.bf16.msra.mxu0 0
      %793 = vmatprep.subr.bf16.mxu0 0
      %794 = vmatpush1.bf16.msra.mxu0 0
      %795 = vmatprep.subr.bf16.mxu0 0
      %796 = vmatpush1.bf16.msra.mxu0 0
      %797 = vmatprep.subr.bf16.mxu0 0
      %798 = vmatpush1.bf16.msra.mxu0 0
      %799 = vmatprep.subr.bf16.mxu0 0
      %800 = vmatpush1.bf16.msra.mxu0 0
      %801 = vmatprep.subr.bf16.mxu0 0
      %802 = vmatpush1.bf16.msra.mxu0 0
      %803 = vmatprep.subr.bf16.mxu0 0
      %804 = vmatpush1.bf16.msra.mxu0 0
      %805 = vmatprep.subr.bf16.mxu0 0
      %806 = vmatpush1.bf16.msra.mxu0 0
      %807 = vmatprep.subr.bf16.mxu0 0
      %808 = vmatpush1.bf16.msra.mxu0 0
      %809 = vmatprep.subr.bf16.mxu0 0
      %810 = vmatpush1.bf16.msra.mxu0 0
      %811 = vmatprep.subr.bf16.mxu0 0
      %812 = vmatpush1.bf16.msra.mxu0 0
      %813 = vmatprep.subr.bf16.mxu0 0
      %814 = vmatpush1.bf16.msra.mxu0 0
      %815 = vmatprep.mubr.bf16.mxu0 0
      %816 = vmatmul.mubr.bf16.gmra.mrb[0].mxu0 %v731
      %v817 = vpop.f32.mrb[0].mxu0
      %v818 = vadd.f32 %v725, %v817
      %v819 = vpop.f32.mrb[0].mxu0
      %v820 = vpop.f32.mrb[0].mxu0
      %v821 = vpop.f32.mrb[0].mxu0
      %822 = vdwg.mxu0
      %s823 = scalar_lea.vmem %s2, 8
      %v824 = vld [vmem:[%s823] sm:$0xf]
      %v825 = vld [vmem:[#allocation2] sm:$0x3f]
      %v827 = vcombine.high %v825, %v825
      %v829 = vunpack.c.l.s4 1983009808
      %v830 = vunpack.c.0.s8 %v829
      %v831 = vlaneseq
      %v832 = vshrl.u32 %v831, 7
      %v833 = vsub.s32 %v830, %v832
      %v834 = vrot.slane %v825, %v833
      %v836 = vunpack.c.l.s4 1983009808
      %v837 = vunpack.c.0.s8 %v836
      %v838 = vlaneseq
      %v839 = vshrl.u32 %v838, 7
      %v840 = vsub.s32 %v837, %v839
      %v841 = vrot.slane %v827, %v840
      %v842 = vcombine.high %v834, %v834
      %843 = vrot.lane.b32.xlu0 %v834, 126
      %v844 = vpop.permute.xlu0 %843
      %845 = vrot.lane.b32.xlu0 %v842, 126
      %v846 = vpop.permute.xlu0 %845
      %847 = vrot.lane.b32.xlu0 %v841, 126
      %v848 = vpop.permute.xlu0 %847
      %vm849 = vcmask 1031168
      %v850 = vsel %vm849, %v844, %v846
      %v851 = vsel %vm849, %v846, %v848
      %v853 = vsel %vm256, %v824, 0
      %v856 = vsel %vm260, %v850, 0
      %v859 = vsel %vm260, %v851, 0
      %v862 = vsel %vm260, %v848, 0
      %864 = vmatprep.subr.bf16.mxu0 %v859
      %865 = vmatpush1.bf16.msra.mxu0 %v856
      %866 = vmatprep.subr.bf16.mxu0 0
      %867 = vmatpush1.bf16.msra.mxu0 0
      %868 = vmatprep.subr.bf16.mxu0 0
      %869 = vmatpush1.bf16.msra.mxu0 0
      %870 = vmatprep.subr.bf16.mxu0 0
      %871 = vmatpush1.bf16.msra.mxu0 0
      %872 = vmatprep.subr.bf16.mxu0 0
      %873 = vmatpush1.bf16.msra.mxu0 0
      %874 = vmatprep.subr.bf16.mxu0 0
      %875 = vmatpush1.bf16.msra.mxu0 0
      %876 = vmatprep.subr.bf16.mxu0 0
      %877 = vmatpush1.bf16.msra.mxu0 0
      %878 = vmatprep.subr.bf16.mxu0 0
      %879 = vmatpush1.bf16.msra.mxu0 0
      %880 = vmatprep.subr.bf16.mxu0 0
      %881 = vmatpush1.bf16.msra.mxu0 0
      %882 = vmatprep.subr.bf16.mxu0 0
      %883 = vmatpush1.bf16.msra.mxu0 0
      %884 = vmatprep.subr.bf16.mxu0 0
      %885 = vmatpush1.bf16.msra.mxu0 0
      %886 = vmatprep.subr.bf16.mxu0 0
      %887 = vmatpush1.bf16.msra.mxu0 0
      %888 = vmatprep.subr.bf16.mxu0 0
      %889 = vmatpush1.bf16.msra.mxu0 0
      %890 = vmatprep.subr.bf16.mxu0 0
      %891 = vmatpush1.bf16.msra.mxu0 0
      %892 = vmatprep.subr.bf16.mxu0 0
      %893 = vmatpush1.bf16.msra.mxu0 0
      %894 = vmatprep.subr.bf16.mxu0 0
      %895 = vmatpush1.bf16.msra.mxu0 0
      %896 = vmatprep.mubr.bf16.mxu0 0
      %897 = vmatmul.mubr.bf16.gmra.mrb[0].mxu0 %v853
      %v898 = vpop.f32.mrb[0].mxu0
      %v899 = vadd.f32 0.0, %v898
      %v900 = vpop.f32.mrb[0].mxu0
      %v901 = vadd.f32 0.0, %v900
      %v902 = vpop.f32.mrb[0].mxu0
      %v903 = vpop.f32.mrb[0].mxu0
      %904 = vdwg.mxu0
      %905 = vmatprep.subr.bf16.mxu0 0
      %906 = vmatpush1.bf16.msra.mxu0 %v862
      %907 = vmatprep.subr.bf16.mxu0 0
      %908 = vmatpush1.bf16.msra.mxu0 0
      %909 = vmatprep.subr.bf16.mxu0 0
      %910 = vmatpush1.bf16.msra.mxu0 0
      %911 = vmatprep.subr.bf16.mxu0 0
      %912 = vmatpush1.bf16.msra.mxu0 0
      %913 = vmatprep.subr.bf16.mxu0 0
      %914 = vmatpush1.bf16.msra.mxu0 0
      %915 = vmatprep.subr.bf16.mxu0 0
      %916 = vmatpush1.bf16.msra.mxu0 0
      %917 = vmatprep.subr.bf16.mxu0 0
      %918 = vmatpush1.bf16.msra.mxu0 0
      %919 = vmatprep.subr.bf16.mxu0 0
      %920 = vmatpush1.bf16.msra.mxu0 0
      %921 = vmatprep.subr.bf16.mxu0 0
      %922 = vmatpush1.bf16.msra.mxu0 0
      %923 = vmatprep.subr.bf16.mxu0 0
      %924 = vmatpush1.bf16.msra.mxu0 0
      %925 = vmatprep.subr.bf16.mxu0 0
      %926 = vmatpush1.bf16.msra.mxu0 0
      %927 = vmatprep.subr.bf16.mxu0 0
      %928 = vmatpush1.bf16.msra.mxu0 0
      %929 = vmatprep.subr.bf16.mxu0 0
      %930 = vmatpush1.bf16.msra.mxu0 0
      %931 = vmatprep.subr.bf16.mxu0 0
      %932 = vmatpush1.bf16.msra.mxu0 0
      %933 = vmatprep.subr.bf16.mxu0 0
      %934 = vmatpush1.bf16.msra.mxu0 0
      %935 = vmatprep.subr.bf16.mxu0 0
      %936 = vmatpush1.bf16.msra.mxu0 0
      %937 = vmatprep.mubr.bf16.mxu0 0
      %938 = vmatmul.mubr.bf16.gmra.mrb[0].mxu0 %v853
      %v939 = vpop.f32.mrb[0].mxu0
      %v940 = vadd.f32 0.0, %v939
      %v941 = vpop.f32.mrb[0].mxu0
      %v942 = vpop.f32.mrb[0].mxu0
      %v943 = vpop.f32.mrb[0].mxu0
      %944 = vdwg.mxu0
      %v945 = vadd.f32 %v777, %v899
      %v946 = vadd.f32 %v779, %v901
      %v947 = vadd.f32 %v818, %v940
      %v948 = vld [vmem:[%s3] sm:$0xff]
      %950 = vset.pattern.permute.xlu0 0
      %951 = vperm.xlu0 %950, %v948
      %v952 = vpop.permute.xlu0 %951
      %v954 = vmul.f32 %v945, %v952
      %v955 = vmul.f32 %v946, %v952
      %v956 = vmul.f32 %v947, %v952
      %v957 = vld [vmem:[%s4] sm:$0xff]
      %959 = vset.pattern.permute.xlu0 0
      %960 = vperm.xlu0 %959, %v957
      %v961 = vpop.permute.xlu0 %960
      %v963 = vadd.f32 %v954, %v961
      %v964 = vadd.f32 %v955, %v961
      %v965 = vadd.f32 %v956, %v961
      %v966 = vmax.f32 %v963, 0.0
      %v967 = vmax.f32 %v964, 0.0
      %v968 = vmax.f32 %v965, 0.0
      %969 = vst [vmem:[%s224] sm:$0xff] %v966
      %970 = vst [vmem:[%s224 + $0x8] sm:$0xff] %v967
      %vm971 = vcmask 850944
      %972 = vst.msk [vmem:[%s224 + $0x10] sm:$0xff] %vm971, %v968
      %p973 = scmp.lt.s32.totalorder %s16, 1
      %s974 = scalar_select %p973, %s16, 1
      %s975 = smul.addr %s974, 3
      %s976 = smul.addr %s975, 8
      %s977 = scalar_lea.vmem %s5, %s976
      // Predicated region
      $region41: #{fac_conv_forward.3} parent=39 // pred_check
        %p978 = pneg %p144
      $region42: #{fac_conv_forward.3} parent=39 // pred_check_branch
        %980 = sbr.rel (%p978) target = $region44
      $region43: #{fac_conv_forward.3} parent=39 // pred_region
        _
      $region44: #{fac_conv_forward.3} parent=39 // pred_fallthru
        _
    $region40: #{fac_conv_forward.3} parent=5 // pred_fallthru
      _
    %p981 = scmp.le.s32.totalorder 2, %s11
    // Predicated region
    $region45: #{fac_conv_forward.3} parent=5 // pred_check
      %p982 = pneg %p981
    $region46: #{fac_conv_forward.3} parent=5 // pred_check_branch
      %984 = sbr.rel (%p982) target = $region48
    $region47: #{fac_conv_forward.3} parent=5 // pred_region
      %s985 = ssub.s32 %s11, 2
      // Predicated region
      $region49: #{fac_conv_forward.3} parent=47 // pred_check
        %p986 = pneg %p150
      $region50: #{fac_conv_forward.3} parent=47 // pred_check_branch
        %988 = sbr.rel (%p986) target = $region52
      $region51: #{fac_conv_forward.3} parent=47 // pred_region
        %p989 = scmp.lt.s32.totalorder %s17, 1
        %s990 = scalar_select %p989, %s17, 1
        %s991 = smul.addr %s990, 3
        %s992 = smul.addr %s991, 8
        %s993 = scalar_lea.vmem %s5, %s992
      $region52: #{fac_conv_forward.3} parent=47 // pred_fallthru
        _
    $region48: #{fac_conv_forward.3} parent=5 // pred_fallthru
      _
  $region6: #{fac_conv_forward.3} parent=0 // loop_footer
    %s15 = sadd.s32 1, %s11
  $region7: #{fac_conv_forward.3} parent=0 // loop_footer_branch
    %10 = sbr.rel target = $region3
  $region8: #{fac_conv_forward.3} parent=0 // loop_exit
    _

// kernel: fac_conv_forward.2
$region0: #{fac_conv_forward.2}
  #allocation0 [shape = 'u32[]', space=smem, size = 0x4, offset = 0x4, fixed_abs, tag = 'smem constant byte address 0x4 - core index']
  #allocation1 [shape = 'u32[144,128]{1,0:T(1,128)}', space=vmem, size = 0x12000, scoped, tag = 'internal scratch']
  #allocation2 [shape = 'bf16[4,362]{1,0:T(4,128)(2,1)}', space=vmem, size = 0xc00, scoped, tag = 'scratch operand']
  %s0 = inlined_call_operand.vmem [shape: bf16[2,4,360], index: 0, kind: input, shape index: {}]
  %s1 = inlined_call_operand.vmem [shape: bf16[3,4,4], index: 1, kind: input, shape index: {}]
  %s2 = inlined_call_operand.vmem [shape: bf16[3,8,4], index: 2, kind: input, shape index: {}]
  %s3 = inlined_call_operand.vmem [shape: f32[1,360], index: 3, kind: input, shape index: {}]
  %s4 = inlined_call_operand.vmem [shape: f32[2,8,1], index: 4, kind: output, shape index: {0}]
  %s5 = inlined_call_operand.vmem [shape: f32[2,8,1], index: 5, kind: output, shape index: {1}]
  %6 = xla_tuple %s4, %s5
  %s7 = sld [smem:[#allocation0]]
  $region57: #{fac_conv_forward.2} parent=0
    _
  %s9 = ssub.s32 1, %s7
  %s10 = scalar_select 0, %s9, %s7
  loop: start=0, step=1, limit=4
  $region2: #{fac_conv_forward.2} parent=0 // loop_pre_header
    _
  $region3: #{fac_conv_forward.2} parent=0 // loop_header
    %s12 = sphi 0, %s16
    %p13 = scmp.ge.s32.totalorder %s12, 4
    %s22 = sphi 0, %s24
    %s25 = sphi 0, %s22
    %s26 = sphi 0, %s25
    %s42 = sphi 0, %s26
    %s46 = sphi 0, %s46
    %s48 = sphi 0, %s46
    %s49 = sphi 0, %s48
    %s63 = sphi 0, %s49
    %s67 = sphi 0, %s67
    %s69 = sphi 0, %s67
    %s70 = sphi 0, %s69
    %s84 = sphi 0, %s70
    %s88 = sphi 0, %s88
    %s90 = sphi 0, %s88
    %s91 = sphi 0, %s90
    %s105 = sphi 0, %s91
    %s111 = sphi 0, %s113
    %s114 = sphi 0, %s111
    %s115 = sphi 0, %s114
    %s131 = sphi 0, %s115
    %s137 = sphi 0, %s139
    %s140 = sphi 0, %s137
    %s141 = sphi 0, %s140
    %s157 = sphi 0, %s141
  $region4: #{fac_conv_forward.2} parent=0 // loop_header_branch
    %15 = sbr.rel (%p13) target = $region8
  $region5: #{fac_conv_forward.2} parent=0 // loop_body
    %s17 = ssub.s32 %s12, 1
    %s18 = ssub.s32 %s12, 2
    %s19 = sadd.s32 %s12, 1
    %s20 = ssub.s32 %s12, %s19
    %p21 = scmp.eq.s32.totalorder %s20, 0
    %s23 = sadd.s32 %s22, 1
    %s24 = scalar_select %p21, %s22, %s23
    %p27 = pneg %p21
    %p28 = scmp.eq.s32.totalorder %s12, 1
    %p29 = por %p27, %p28
    %p30 = scmp.ne.s32.totalorder %s22, %s25
    %p31 = scmp.eq.s32.totalorder %s12, 0
    %p32 = por %p30, %p31
    %p33 = scmp.ne.s32.totalorder %s22, %s25
    %p34 = scmp.eq.s32.totalorder %s17, 1
    %p35 = por %p33, %p34
    %p36 = scmp.ne.s32.totalorder %s25, %s26
    %p37 = scmp.eq.s32.totalorder %s17, 0
    %p38 = por %p36, %p37
    %p39 = scmp.ne.s32.totalorder %s25, %s26
    %p40 = scmp.eq.s32.totalorder %s18, 1
    %p41 = por %p39, %p40
    %p43 = scmp.ne.s32.totalorder %s26, %s42
    %p44 = scmp.eq.s32.totalorder %s18, 0
    %p45 = por %p43, %p44
    %s47 = sadd.s32 %s46, 1
    %p50 = scmp.eq.s32.totalorder %s12, 1
    %p51 = scmp.ne.s32.totalorder %s46, %s48
    %p52 = scmp.eq.s32.totalorder %s12, 0
    %p53 = por %p51, %p52
    %p54 = scmp.ne.s32.totalorder %s46, %s48
    %p55 = scmp.eq.s32.totalorder %s17, 1
    %p56 = por %p54, %p55
    %p57 = scmp.ne.s32.totalorder %s48, %s49
    %p58 = scmp.eq.s32.totalorder %s17, 0
    %p59 = por %p57, %p58
    %p60 = scmp.ne.s32.totalorder %s48, %s49
    %p61 = scmp.eq.s32.totalorder %s18, 1
    %p62 = por %p60, %p61
    %p64 = scmp.ne.s32.totalorder %s49, %s63
    %p65 = scmp.eq.s32.totalorder %s18, 0
    %p66 = por %p64, %p65
    %s68 = sadd.s32 %s67, 1
    %p71 = scmp.eq.s32.totalorder %s12, 1
    %p72 = scmp.ne.s32.totalorder %s67, %s69
    %p73 = scmp.eq.s32.totalorder %s12, 0
    %p74 = por %p72, %p73
    %p75 = scmp.ne.s32.totalorder %s67, %s69
    %p76 = scmp.eq.s32.totalorder %s17, 1
    %p77 = por %p75, %p76
    %p78 = scmp.ne.s32.totalorder %s69, %s70
    %p79 = scmp.eq.s32.totalorder %s17, 0
    %p80 = por %p78, %p79
    %p81 = scmp.ne.s32.totalorder %s69, %s70
    %p82 = scmp.eq.s32.totalorder %s18, 1
    %p83 = por %p81, %p82
    %p85 = scmp.ne.s32.totalorder %s70, %s84
    %p86 = scmp.eq.s32.totalorder %s18, 0
    %p87 = por %p85, %p86
    %s89 = sadd.s32 %s88, 1
    %p92 = scmp.eq.s32.totalorder %s12, 1
    %p93 = scmp.ne.s32.totalorder %s88, %s90
    %p94 = scmp.eq.s32.totalorder %s12, 0
    %p95 = por %p93, %p94
    %p96 = scmp.ne.s32.totalorder %s88, %s90
    %p97 = scmp.eq.s32.totalorder %s17, 1
    %p98 = por %p96, %p97
    %p99 = scmp.ne.s32.totalorder %s90, %s91
    %p100 = scmp.eq.s32.totalorder %s17, 0
    %p101 = por %p99, %p100
    %p102 = scmp.ne.s32.totalorder %s90, %s91
    %p103 = scmp.eq.s32.totalorder %s18, 1
    %p104 = por %p102, %p103
    %p106 = scmp.ne.s32.totalorder %s91, %s105
    %p107 = scmp.eq.s32.totalorder %s18, 0
    %p108 = por %p106, %p107
    %s109 = ssub.s32 %s12, %s19
    %p110 = scmp.eq.s32.totalorder %s109, 0
    %s112 = sadd.s32 %s111, 1
    %s113 = scalar_select %p110, %s111, %s112
    %p116 = pneg %p110
    %p117 = scmp.eq.s32.totalorder %s12, 1
    %p118 = por %p116, %p117
    %p119 = scmp.ne.s32.totalorder %s111, %s114
    %p120 = scmp.eq.s32.totalorder %s12, 0
    %p121 = por %p119, %p120
    %p122 = scmp.ne.s32.totalorder %s111, %s114
    %p123 = scmp.eq.s32.totalorder %s17, 1
    %p124 = por %p122, %p123
    %p125 = scmp.ne.s32.totalorder %s114, %s115
    %p126 = scmp.eq.s32.totalorder %s17, 0
    %p127 = por %p125, %p126
    %p128 = scmp.ne.s32.totalorder %s114, %s115
    %p129 = scmp.eq.s32.totalorder %s18, 1
    %p130 = por %p128, %p129
    %p132 = scmp.ne.s32.totalorder %s115, %s131
    %p133 = scmp.eq.s32.totalorder %s18, 0
    %p134 = por %p132, %p133
    %s135 = ssub.s32 %s12, %s19
    %p136 = scmp.eq.s32.totalorder %s135, 0
    %s138 = sadd.s32 %s137, 1
    %s139 = scalar_select %p136, %s137, %s138
    %p142 = pneg %p136
    %p143 = scmp.eq.s32.totalorder %s12, 1
    %p144 = por %p142, %p143
    %p145 = scmp.ne.s32.totalorder %s137, %s140
    %p146 = scmp.eq.s32.totalorder %s12, 0
    %p147 = por %p145, %p146
    %p148 = scmp.ne.s32.totalorder %s137, %s140
    %p149 = scmp.eq.s32.totalorder %s17, 1
    %p150 = por %p148, %p149
    %p151 = scmp.ne.s32.totalorder %s140, %s141
    %p152 = scmp.eq.s32.totalorder %s17, 0
    %p153 = por %p151, %p152
    %p154 = scmp.ne.s32.totalorder %s140, %s141
    %p155 = scmp.eq.s32.totalorder %s18, 1
    %p156 = por %p154, %p155
    %p158 = scmp.ne.s32.totalorder %s141, %s157
    %p159 = scmp.eq.s32.totalorder %s18, 0
    %p160 = por %p158, %p159
    %p161 = scmp.le.s32.totalorder 1, %s12
    %p162 = scmp.lt.s32.totalorder %s12, 3
    %p163 = pnand %p161, %p162
    %p164 = pneg %p163
    // Predicated region
    $region9: #{fac_conv_forward.2} parent=5 // pred_check
      _
    $region10: #{fac_conv_forward.2} parent=5 // pred_check_branch
      %166 = sbr.rel (%p163) target = $region12
    $region11: #{fac_conv_forward.2} parent=5 // pred_region
      %s167 = ssub.s32 %s12, 1
      // Predicated region
      $region13: #{fac_conv_forward.2} parent=11 // pred_check
        %p168 = pneg %p59
      $region14: #{fac_conv_forward.2} parent=11 // pred_check_branch
        %170 = sbr.rel (%p168) target = $region16
      $region15: #{fac_conv_forward.2} parent=11 // pred_region
        _
      $region16: #{fac_conv_forward.2} parent=11 // pred_fallthru
        _
      // Predicated region
      $region17: #{fac_conv_forward.2} parent=11 // pred_check
        %p171 = pneg %p80
      $region18: #{fac_conv_forward.2} parent=11 // pred_check_branch
        %173 = sbr.rel (%p171) target = $region20
      $region19: #{fac_conv_forward.2} parent=11 // pred_region
        _
      $region20: #{fac_conv_forward.2} parent=11 // pred_fallthru
        _
      // Predicated region
      $region21: #{fac_conv_forward.2} parent=11 // pred_check
        %p174 = pneg %p101
      $region22: #{fac_conv_forward.2} parent=11 // pred_check_branch
        %176 = sbr.rel (%p174) target = $region24
      $region23: #{fac_conv_forward.2} parent=11 // pred_region
        _
      $region24: #{fac_conv_forward.2} parent=11 // pred_fallthru
        _
    $region12: #{fac_conv_forward.2} parent=5 // pred_fallthru
      _
    %p177 = scmp.lt.s32.totalorder %s12, 2
    // Predicated region
    $region25: #{fac_conv_forward.2} parent=5 // pred_check
      %p178 = pneg %p177
    $region26: #{fac_conv_forward.2} parent=5 // pred_check_branch
      %180 = sbr.rel (%p178) target = $region28
    $region27: #{fac_conv_forward.2} parent=5 // pred_region
      // Predicated region
      $region29: #{fac_conv_forward.2} parent=27 // pred_check
        %p181 = pneg %p32
      $region30: #{fac_conv_forward.2} parent=27 // pred_check_branch
        %183 = sbr.rel (%p181) target = $region32
      $region31: #{fac_conv_forward.2} parent=27 // pred_region
        %p184 = scmp.lt.s32.totalorder %s12, 1
        %s185 = scalar_select %p184, %s12, 1
        %s186 = smul.addr %s185, 3
        %s187 = smul.addr %s186, 2
        %s188 = scalar_lea.vmem %s0, %s187
      $region32: #{fac_conv_forward.2} parent=27 // pred_fallthru
        _
    $region28: #{fac_conv_forward.2} parent=5 // pred_fallthru
      _
    %p189 = scmp.le.s32.totalorder 1, %s12
    %p190 = scmp.lt.s32.totalorder %s12, 3
    %p191 = pnand %p189, %p190
    %p192 = pneg %p191
    // Predicated region
    $region33: #{fac_conv_forward.2} parent=5 // pred_check
      _
    $region34: #{fac_conv_forward.2} parent=5 // pred_check_branch
      %194 = sbr.rel (%p191) target = $region36
    $region35: #{fac_conv_forward.2} parent=5 // pred_region
      %s195 = ssub.s32 %s12, 1
      %p196 = scmp.lt.s32.totalorder %s17, 1
      %s197 = scalar_select %p196, %s17, 1
      %s198 = smul.addr %s197, 3
      %s199 = smul.addr %s198, 2
      %s200 = scalar_lea.vmem %s0, %s199
      %p201 = pneg %p38
      %p202 = pneg %p35
      %p203 = pneg %p59
      %p204 = pneg %p56
      %p205 = pneg %p80
      %p206 = pneg %p77
      %p207 = pneg %p101
      %p208 = pneg %p98
      %p209 = pneg %p127
      %p210 = pneg %p124
      %p211 = scmp.lt.s32.totalorder %s17, 1
      %s212 = scalar_select %p211, %s17, 1
      %s213 = smul.addr %s212, 8
      %s214 = scalar_lea.vmem %s4, %s213
      %p215 = pneg %p153
      %p216 = pneg %p150
      %p217 = scmp.lt.s32.totalorder %s17, 1
      %s218 = scalar_select %p217, %s17, 1
      %s219 = smul.addr %s218, 8
      %s220 = scalar_lea.vmem %s5, %s219
      %p221 = scmp.lt.s32.totalorder %s17, 1
      %s222 = scalar_select %p221, %s17, 1
      %s223 = smul.addr %s222, 3
      %s224 = smul.addr %s223, 2
      %s225 = scalar_lea.vmem %s0, %s224
      %p226 = scmp.lt.s32.totalorder %s17, 1
      %s227 = scalar_select %p226, %s17, 1
      %s228 = smul.addr %s227, 8
      %s229 = scalar_lea.vmem %s4, %s228
      %p230 = scmp.lt.s32.totalorder %s17, 1
      %s231 = scalar_select %p230, %s17, 1
      %s232 = smul.addr %s231, 8
      %s233 = scalar_lea.vmem %s5, %s232
      %v235 = vld [vmem:[%s1] sm:$0x3]
      %v236 = vld [vmem:[%s225] sm:$0x3f]
      %s237 = scalar_lea.vmem %s1, 2
      %v238 = vld [vmem:[%s237] sm:$0x3]
      %v240 = vcombine.high %v236, %v236
      %v242 = vunpack.c.l.s4 1983009808
      %v243 = vunpack.c.0.s8 %v242
      %v244 = vlaneseq
      %v245 = vshrl.u32 %v244, 7
      %v246 = vsub.s32 %v243, %v245
      %v247 = vrot.slane %v236, %v246
      %v249 = vunpack.c.l.s4 1983009808
      %v250 = vunpack.c.0.s8 %v249
      %v251 = vlaneseq
      %v252 = vshrl.u32 %v251, 7
      %v253 = vsub.s32 %v250, %v252
      %v254 = vrot.slane %v240, %v253
      %v255 = vcombine.high %v247, %v247
      %256 = vrot.lane.b32.xlu0 %v247, 108
      %v257 = vpop.permute.xlu0 %256
      %258 = vrot.lane.b32.xlu0 %v255, 108
      %v259 = vpop.permute.xlu0 %258
      %260 = vrot.lane.b32.xlu0 %v254, 108
      %v261 = vpop.permute.xlu0 %260
      %vm262 = vcmask 883712
      %v263 = vsel %vm262, %v257, %v259
      %v264 = vsel %vm262, %v259, %v261
      %vm265 = vcmask 31744
      %v267 = vsel %vm265, %v238, 0
      %vm269 = vcmask 1041408
      %v271 = vsel %vm269, %v263, 0
      %v274 = vsel %vm269, %v264, 0
      %v277 = vsel %vm269, %v261, 0
      %279 = vmatprep.subr.bf16.mxu0 %v274
      %280 = vmatpush1.bf16.msra.mxu0 %v271
      %281 = vmatprep.subr.bf16.mxu0 0
      %282 = vmatpush1.bf16.msra.mxu0 0
      %283 = vmatprep.subr.bf16.mxu0 0
      %284 = vmatpush1.bf16.msra.mxu0 0
      %285 = vmatprep.subr.bf16.mxu0 0
      %286 = vmatpush1.bf16.msra.mxu0 0
      %287 = vmatprep.subr.bf16.mxu0 0
      %288 = vmatpush1.bf16.msra.mxu0 0
      %289 = vmatprep.subr.bf16.mxu0 0
      %290 = vmatpush1.bf16.msra.mxu0 0
      %291 = vmatprep.subr.bf16.mxu0 0
      %292 = vmatpush1.bf16.msra.mxu0 0
      %293 = vmatprep.subr.bf16.mxu0 0
      %294 = vmatpush1.bf16.msra.mxu0 0
      %295 = vmatprep.subr.bf16.mxu0 0
      %296 = vmatpush1.bf16.msra.mxu0 0
      %297 = vmatprep.subr.bf16.mxu0 0
      %298 = vmatpush1.bf16.msra.mxu0 0
      %299 = vmatprep.subr.bf16.mxu0 0
      %300 = vmatpush1.bf16.msra.mxu0 0
      %301 = vmatprep.subr.bf16.mxu0 0
      %302 = vmatpush1.bf16.msra.mxu0 0
      %303 = vmatprep.subr.bf16.mxu0 0
      %304 = vmatpush1.bf16.msra.mxu0 0
      %305 = vmatprep.subr.bf16.mxu0 0
      %306 = vmatpush1.bf16.msra.mxu0 0
      %307 = vmatprep.subr.bf16.mxu0 0
      %308 = vmatpush1.bf16.msra.mxu0 0
      %309 = vmatprep.subr.bf16.mxu0 0
      %310 = vmatpush1.bf16.msra.mxu0 0
      %311 = vmatprep.mubr.bf16.mxu0 0
      %312 = vmatmul.mubr.bf16.gmra.mrb[0].mxu0 %v267
      %v313 = vpop.f32.mrb[0].mxu0
      %v314 = vadd.f32 0.0, %v313
      %v315 = vpop.f32.mrb[0].mxu0
      %v316 = vadd.f32 0.0, %v315
      %v317 = vpop.f32.mrb[0].mxu0
      %v318 = vpop.f32.mrb[0].mxu0
      %319 = vdwg.mxu0
      %320 = vmatprep.subr.bf16.mxu0 0
      %321 = vmatpush1.bf16.msra.mxu0 %v277
      %322 = vmatprep.subr.bf16.mxu0 0
      %323 = vmatpush1.bf16.msra.mxu0 0
      %324 = vmatprep.subr.bf16.mxu0 0
      %325 = vmatpush1.bf16.msra.mxu0 0
      %326 = vmatprep.subr.bf16.mxu0 0
      %327 = vmatpush1.bf16.msra.mxu0 0
      %328 = vmatprep.subr.bf16.mxu0 0
      %329 = vmatpush1.bf16.msra.mxu0 0
      %330 = vmatprep.subr.bf16.mxu0 0
      %331 = vmatpush1.bf16.msra.mxu0 0
      %332 = vmatprep.subr.bf16.mxu0 0
      %333 = vmatpush1.bf16.msra.mxu0 0
      %334 = vmatprep.subr.bf16.mxu0 0
      %335 = vmatpush1.bf16.msra.mxu0 0
      %336 = vmatprep.subr.bf16.mxu0 0
      %337 = vmatpush1.bf16.msra.mxu0 0
      %338 = vmatprep.subr.bf16.mxu0 0
      %339 = vmatpush1.bf16.msra.mxu0 0
      %340 = vmatprep.subr.bf16.mxu0 0
      %341 = vmatpush1.bf16.msra.mxu0 0
      %342 = vmatprep.subr.bf16.mxu0 0
      %343 = vmatpush1.bf16.msra.mxu0 0
      %344 = vmatprep.subr.bf16.mxu0 0
      %345 = vmatpush1.bf16.msra.mxu0 0
      %346 = vmatprep.subr.bf16.mxu0 0
      %347 = vmatpush1.bf16.msra.mxu0 0
      %348 = vmatprep.subr.bf16.mxu0 0
      %349 = vmatpush1.bf16.msra.mxu0 0
      %350 = vmatprep.subr.bf16.mxu0 0
      %351 = vmatpush1.bf16.msra.mxu0 0
      %352 = vmatprep.mubr.bf16.mxu0 0
      %353 = vmatmul.mubr.bf16.gmra.mrb[0].mxu0 %v267
      %v354 = vpop.f32.mrb[0].mxu0
      %v355 = vadd.f32 0.0, %v354
      %v356 = vpop.f32.mrb[0].mxu0
      %v357 = vpop.f32.mrb[0].mxu0
      %v358 = vpop.f32.mrb[0].mxu0
      %359 = vdwg.mxu0
      %v361 = vsel %vm265, %v235, 0
      %v364 = vsel %vm269, %v247, 0
      %v367 = vsel %vm269, %v255, 0
      %v370 = vsel %vm269, %v254, 0
      %372 = vmatprep.subr.bf16.mxu0 %v367
      %373 = vmatpush1.bf16.msra.mxu0 %v364
      %374 = vmatprep.subr.bf16.mxu0 0
      %375 = vmatpush1.bf16.msra.mxu0 0
      %376 = vmatprep.subr.bf16.mxu0 0
      %377 = vmatpush1.bf16.msra.mxu0 0
      %378 = vmatprep.subr.bf16.mxu0 0
      %379 = vmatpush1.bf16.msra.mxu0 0
      %380 = vmatprep.subr.bf16.mxu0 0
      %381 = vmatpush1.bf16.msra.mxu0 0
      %382 = vmatprep.subr.bf16.mxu0 0
      %383 = vmatpush1.bf16.msra.mxu0 0
      %384 = vmatprep.subr.bf16.mxu0 0
      %385 = vmatpush1.bf16.msra.mxu0 0
      %386 = vmatprep.subr.bf16.mxu0 0
      %387 = vmatpush1.bf16.msra.mxu0 0
      %388 = vmatprep.subr.bf16.mxu0 0
      %389 = vmatpush1.bf16.msra.mxu0 0
      %390 = vmatprep.subr.bf16.mxu0 0
      %391 = vmatpush1.bf16.msra.mxu0 0
      %392 = vmatprep.subr.bf16.mxu0 0
      %393 = vmatpush1.bf16.msra.mxu0 0
      %394 = vmatprep.subr.bf16.mxu0 0
      %395 = vmatpush1.bf16.msra.mxu0 0
      %396 = vmatprep.subr.bf16.mxu0 0
      %397 = vmatpush1.bf16.msra.mxu0 0
      %398 = vmatprep.subr.bf16.mxu0 0
      %399 = vmatpush1.bf16.msra.mxu0 0
      %400 = vmatprep.subr.bf16.mxu0 0
      %401 = vmatpush1.bf16.msra.mxu0 0
      %402 = vmatprep.subr.bf16.mxu0 0
      %403 = vmatpush1.bf16.msra.mxu0 0
      %404 = vmatprep.mubr.bf16.mxu0 0
      %405 = vmatmul.mubr.bf16.gmra.mrb[0].mxu0 %v361
      %v406 = vpop.f32.mrb[0].mxu0
      %v407 = vadd.f32 %v314, %v406
      %v408 = vpop.f32.mrb[0].mxu0
      %v409 = vadd.f32 %v316, %v408
      %v410 = vpop.f32.mrb[0].mxu0
      %v411 = vpop.f32.mrb[0].mxu0
      %412 = vdwg.mxu0
      %413 = vmatprep.subr.bf16.mxu0 0
      %414 = vmatpush1.bf16.msra.mxu0 %v370
      %415 = vmatprep.subr.bf16.mxu0 0
      %416 = vmatpush1.bf16.msra.mxu0 0
      %417 = vmatprep.subr.bf16.mxu0 0
      %418 = vmatpush1.bf16.msra.mxu0 0
      %419 = vmatprep.subr.bf16.mxu0 0
      %420 = vmatpush1.bf16.msra.mxu0 0
      %421 = vmatprep.subr.bf16.mxu0 0
      %422 = vmatpush1.bf16.msra.mxu0 0
      %423 = vmatprep.subr.bf16.mxu0 0
      %424 = vmatpush1.bf16.msra.mxu0 0
      %425 = vmatprep.subr.bf16.mxu0 0
      %426 = vmatpush1.bf16.msra.mxu0 0
      %427 = vmatprep.subr.bf16.mxu0 0
      %428 = vmatpush1.bf16.msra.mxu0 0
      %429 = vmatprep.subr.bf16.mxu0 0
      %430 = vmatpush1.bf16.msra.mxu0 0
      %431 = vmatprep.subr.bf16.mxu0 0
      %432 = vmatpush1.bf16.msra.mxu0 0
      %433 = vmatprep.subr.bf16.mxu0 0
      %434 = vmatpush1.bf16.msra.mxu0 0
      %435 = vmatprep.subr.bf16.mxu0 0
      %436 = vmatpush1.bf16.msra.mxu0 0
      %437 = vmatprep.subr.bf16.mxu0 0
      %438 = vmatpush1.bf16.msra.mxu0 0
      %439 = vmatprep.subr.bf16.mxu0 0
      %440 = vmatpush1.bf16.msra.mxu0 0
      %441 = vmatprep.subr.bf16.mxu0 0
      %442 = vmatpush1.bf16.msra.mxu0 0
      %443 = vmatprep.subr.bf16.mxu0 0
      %444 = vmatpush1.bf16.msra.mxu0 0
      %445 = vmatprep.mubr.bf16.mxu0 0
      %446 = vmatmul.mubr.bf16.gmra.mrb[0].mxu0 %v361
      %v447 = vpop.f32.mrb[0].mxu0
      %v448 = vadd.f32 %v355, %v447
      %v449 = vpop.f32.mrb[0].mxu0
      %v450 = vpop.f32.mrb[0].mxu0
      %v451 = vpop.f32.mrb[0].mxu0
      %452 = vdwg.mxu0
      %s453 = scalar_lea.vmem %s1, 4
      %v454 = vld [vmem:[%s453] sm:$0x3]
      %v455 = vld [vmem:[%s225] sm:$0x3f]
      %v457 = vcombine.high %v455, %v455
      %v459 = vunpack.c.l.s4 1983009808
      %v460 = vunpack.c.0.s8 %v459
      %v461 = vlaneseq
      %v462 = vshrl.u32 %v461, 7
      %v463 = vsub.s32 %v460, %v462
      %v464 = vrot.slane %v455, %v463
      %v466 = vunpack.c.l.s4 1983009808
      %v467 = vunpack.c.0.s8 %v466
      %v468 = vlaneseq
      %v469 = vshrl.u32 %v468, 7
      %v470 = vsub.s32 %v467, %v469
      %v471 = vrot.slane %v457, %v470
      %v472 = vcombine.high %v464, %v464
      %473 = vrot.lane.b32.xlu0 %v464, 88
      %v474 = vpop.permute.xlu0 %473
      %475 = vrot.lane.b32.xlu0 %v472, 88
      %v476 = vpop.permute.xlu0 %475
      %477 = vrot.lane.b32.xlu0 %v471, 88
      %v478 = vpop.permute.xlu0 %477
      %vm479 = vcmask 719872
      %v480 = vsel %vm479, %v474, %v476
      %v481 = vsel %vm479, %v476, %v478
      %v483 = vsel %vm265, %v454, 0
      %v486 = vsel %vm269, %v480, 0
      %v489 = vsel %vm269, %v481, 0
      %v492 = vsel %vm269, %v478, 0
      %494 = vmatprep.subr.bf16.mxu0 %v489
      %495 = vmatpush1.bf16.msra.mxu0 %v486
      %496 = vmatprep.subr.bf16.mxu0 0
      %497 = vmatpush1.bf16.msra.mxu0 0
      %498 = vmatprep.subr.bf16.mxu0 0
      %499 = vmatpush1.bf16.msra.mxu0 0
      %500 = vmatprep.subr.bf16.mxu0 0
      %501 = vmatpush1.bf16.msra.mxu0 0
      %502 = vmatprep.subr.bf16.mxu0 0
      %503 = vmatpush1.bf16.msra.mxu0 0
      %504 = vmatprep.subr.bf16.mxu0 0
      %505 = vmatpush1.bf16.msra.mxu0 0
      %506 = vmatprep.subr.bf16.mxu0 0
      %507 = vmatpush1.bf16.msra.mxu0 0
      %508 = vmatprep.subr.bf16.mxu0 0
      %509 = vmatpush1.bf16.msra.mxu0 0
      %510 = vmatprep.subr.bf16.mxu0 0
      %511 = vmatpush1.bf16.msra.mxu0 0
      %512 = vmatprep.subr.bf16.mxu0 0
      %513 = vmatpush1.bf16.msra.mxu0 0
      %514 = vmatprep.subr.bf16.mxu0 0
      %515 = vmatpush1.bf16.msra.mxu0 0
      %516 = vmatprep.subr.bf16.mxu0 0
      %517 = vmatpush1.bf16.msra.mxu0 0
      %518 = vmatprep.subr.bf16.mxu0 0
      %519 = vmatpush1.bf16.msra.mxu0 0
      %520 = vmatprep.subr.bf16.mxu0 0
      %521 = vmatpush1.bf16.msra.mxu0 0
      %522 = vmatprep.subr.bf16.mxu0 0
      %523 = vmatpush1.bf16.msra.mxu0 0
      %524 = vmatprep.subr.bf16.mxu0 0
      %525 = vmatpush1.bf16.msra.mxu0 0
      %526 = vmatprep.mubr.bf16.mxu0 0
      %527 = vmatmul.mubr.bf16.gmra.mrb[0].mxu0 %v483
      %v528 = vpop.f32.mrb[0].mxu0
      %v529 = vadd.f32 0.0, %v528
      %v530 = vpop.f32.mrb[0].mxu0
      %v531 = vadd.f32 0.0, %v530
      %v532 = vpop.f32.mrb[0].mxu0
      %v533 = vpop.f32.mrb[0].mxu0
      %534 = vdwg.mxu0
      %535 = vmatprep.subr.bf16.mxu0 0
      %536 = vmatpush1.bf16.msra.mxu0 %v492
      %537 = vmatprep.subr.bf16.mxu0 0
      %538 = vmatpush1.bf16.msra.mxu0 0
      %539 = vmatprep.subr.bf16.mxu0 0
      %540 = vmatpush1.bf16.msra.mxu0 0
      %541 = vmatprep.subr.bf16.mxu0 0
      %542 = vmatpush1.bf16.msra.mxu0 0
      %543 = vmatprep.subr.bf16.mxu0 0
      %544 = vmatpush1.bf16.msra.mxu0 0
      %545 = vmatprep.subr.bf16.mxu0 0
      %546 = vmatpush1.bf16.msra.mxu0 0
      %547 = vmatprep.subr.bf16.mxu0 0
      %548 = vmatpush1.bf16.msra.mxu0 0
      %549 = vmatprep.subr.bf16.mxu0 0
      %550 = vmatpush1.bf16.msra.mxu0 0
      %551 = vmatprep.subr.bf16.mxu0 0
      %552 = vmatpush1.bf16.msra.mxu0 0
      %553 = vmatprep.subr.bf16.mxu0 0
      %554 = vmatpush1.bf16.msra.mxu0 0
      %555 = vmatprep.subr.bf16.mxu0 0
      %556 = vmatpush1.bf16.msra.mxu0 0
      %557 = vmatprep.subr.bf16.mxu0 0
      %558 = vmatpush1.bf16.msra.mxu0 0
      %559 = vmatprep.subr.bf16.mxu0 0
      %560 = vmatpush1.bf16.msra.mxu0 0
      %561 = vmatprep.subr.bf16.mxu0 0
      %562 = vmatpush1.bf16.msra.mxu0 0
      %563 = vmatprep.subr.bf16.mxu0 0
      %564 = vmatpush1.bf16.msra.mxu0 0
      %565 = vmatprep.subr.bf16.mxu0 0
      %566 = vmatpush1.bf16.msra.mxu0 0
      %567 = vmatprep.mubr.bf16.mxu0 0
      %568 = vmatmul.mubr.bf16.gmra.mrb[0].mxu0 %v483
      %v569 = vpop.f32.mrb[0].mxu0
      %v570 = vadd.f32 0.0, %v569
      %v571 = vpop.f32.mrb[0].mxu0
      %v572 = vpop.f32.mrb[0].mxu0
      %v573 = vpop.f32.mrb[0].mxu0
      %574 = vdwg.mxu0
      %v575 = vadd.f32 %v407, %v529
      %v576 = vadd.f32 %v409, %v531
      %v577 = vadd.f32 %v448, %v570
      %vm578 = vcmask 156672
      %579 = vst.msk [vmem:[#allocation2] sm:$0x3] %vm578, 0
      %vm580 = vcmask 861856
      %581 = vst.msk [vmem:[#allocation2 + $0x4] sm:$0x3] %vm580, 0
      %v582 = vpack.c.bf16 %v575, %v575
      %v583 = vpack.c.bf16 %v576, %v576
      %v584 = vpack.c.bf16 %v577, %v577
      %v588 = vcombine.low %v582, %v583
      %v590 = vunpack.c.l.s4 1983009808
      %v591 = vunpack.c.0.s8 %v590
      %v592 = vlaneseq
      %v593 = vshrl.u32 %v592, 7
      %v594 = vsub.s32 %v591, %v593
      %v595 = vrot.slane %v588, %v594
      %v597 = vunpack.c.l.s4 1983009808
      %v598 = vunpack.c.0.s8 %v597
      %v599 = vlaneseq
      %v600 = vshrl.u32 %v599, 7
      %v601 = vsub.s32 %v598, %v600
      %v602 = vrot.slane %v584, %v601
      %v603 = vcombine.low %v595, %v602
      %604 = vrot.lane.b32.xlu0 %v603, 20
      %v605 = vpop.permute.xlu0 %604
      %v606 = vrot.slane %v605, 6
      %vm607 = vcmask 162816
      %v608 = vsel %vm607, %v606, %v605
      %vm610 = vcmask 1041568
      %vm611 = vcmask 1043458
      %vm612 = vmor %vm611, %vm610
      %vm613 = vcmask 685060
      %vm614 = vmor %vm613, %vm612
      %615 = vst.msk [vmem:[#allocation2] sm:$0x3f] %vm614, %v608
      %v616 = vld [vmem:[%s2] sm:$0xf]
      %v617 = vld [vmem:[#allocation2] sm:$0x3f]
      %s618 = scalar_lea.vmem %s2, 4
      %v619 = vld [vmem:[%s618] sm:$0xf]
      %v621 = vcombine.high %v617, %v617
      %v623 = vunpack.c.l.s4 1983009808
      %v624 = vunpack.c.0.s8 %v623
      %v625 = vlaneseq
      %v626 = vshrl.u32 %v625, 7
      %v627 = vsub.s32 %v624, %v626
      %v628 = vrot.slane %v617, %v627
      %v630 = vunpack.c.l.s4 1983009808
      %v631 = vunpack.c.0.s8 %v630
      %v632 = vlaneseq
      %v633 = vshrl.u32 %v632, 7
      %v634 = vsub.s32 %v631, %v633
      %v635 = vrot.slane %v621, %v634
      %v636 = vcombine.high %v628, %v628
      %637 = vrot.lane.b32.xlu0 %v628, 127
      %v638 = vpop.permute.xlu0 %637
      %639 = vrot.lane.b32.xlu0 %v636, 127
      %v640 = vpop.permute.xlu0 %639
      %641 = vrot.lane.b32.xlu0 %v635, 127
      %v642 = vpop.permute.xlu0 %641
      %vm643 = vcmask 1039360
      %v644 = vsel %vm643, %v638, %v640
      %v645 = vsel %vm643, %v640, %v642
      %v647 = vsel %vm265, %v619, 0
      %v650 = vsel %vm269, %v644, 0
      %v653 = vsel %vm269, %v645, 0
      %v656 = vsel %vm269, %v642, 0
      %658 = vmatprep.subr.bf16.mxu0 %v653
      %659 = vmatpush1.bf16.msra.mxu0 %v650
      %660 = vmatprep.subr.bf16.mxu0 0
      %661 = vmatpush1.bf16.msra.mxu0 0
      %662 = vmatprep.subr.bf16.mxu0 0
      %663 = vmatpush1.bf16.msra.mxu0 0
      %664 = vmatprep.subr.bf16.mxu0 0
      %665 = vmatpush1.bf16.msra.mxu0 0
      %666 = vmatprep.subr.bf16.mxu0 0
      %667 = vmatpush1.bf16.msra.mxu0 0
      %668 = vmatprep.subr.bf16.mxu0 0
      %669 = vmatpush1.bf16.msra.mxu0 0
      %670 = vmatprep.subr.bf16.mxu0 0
      %671 = vmatpush1.bf16.msra.mxu0 0
      %672 = vmatprep.subr.bf16.mxu0 0
      %673 = vmatpush1.bf16.msra.mxu0 0
      %674 = vmatprep.subr.bf16.mxu0 0
      %675 = vmatpush1.bf16.msra.mxu0 0
      %676 = vmatprep.subr.bf16.mxu0 0
      %677 = vmatpush1.bf16.msra.mxu0 0
      %678 = vmatprep.subr.bf16.mxu0 0
      %679 = vmatpush1.bf16.msra.mxu0 0
      %680 = vmatprep.subr.bf16.mxu0 0
      %681 = vmatpush1.bf16.msra.mxu0 0
      %682 = vmatprep.subr.bf16.mxu0 0
      %683 = vmatpush1.bf16.msra.mxu0 0
      %684 = vmatprep.subr.bf16.mxu0 0
      %685 = vmatpush1.bf16.msra.mxu0 0
      %686 = vmatprep.subr.bf16.mxu0 0
      %687 = vmatpush1.bf16.msra.mxu0 0
      %688 = vmatprep.subr.bf16.mxu0 0
      %689 = vmatpush1.bf16.msra.mxu0 0
      %690 = vmatprep.mubr.bf16.mxu0 0
      %691 = vmatmul.mubr.bf16.gmra.mrb[0].mxu0 %v647
      %v692 = vpop.f32.mrb[0].mxu0
      %v693 = vadd.f32 0.0, %v692
      %v694 = vpop.f32.mrb[0].mxu0
      %v695 = vadd.f32 0.0, %v694
      %v696 = vpop.f32.mrb[0].mxu0
      %v697 = vpop.f32.mrb[0].mxu0
      %698 = vdwg.mxu0
      %699 = vmatprep.subr.bf16.mxu0 0
      %700 = vmatpush1.bf16.msra.mxu0 %v656
      %701 = vmatprep.subr.bf16.mxu0 0
      %702 = vmatpush1.bf16.msra.mxu0 0
      %703 = vmatprep.subr.bf16.mxu0 0
      %704 = vmatpush1.bf16.msra.mxu0 0
      %705 = vmatprep.subr.bf16.mxu0 0
      %706 = vmatpush1.bf16.msra.mxu0 0
      %707 = vmatprep.subr.bf16.mxu0 0
      %708 = vmatpush1.bf16.msra.mxu0 0
      %709 = vmatprep.subr.bf16.mxu0 0
      %710 = vmatpush1.bf16.msra.mxu0 0
      %711 = vmatprep.subr.bf16.mxu0 0
      %712 = vmatpush1.bf16.msra.mxu0 0
      %713 = vmatprep.subr.bf16.mxu0 0
      %714 = vmatpush1.bf16.msra.mxu0 0
      %715 = vmatprep.subr.bf16.mxu0 0
      %716 = vmatpush1.bf16.msra.mxu0 0
      %717 = vmatprep.subr.bf16.mxu0 0
      %718 = vmatpush1.bf16.msra.mxu0 0
      %719 = vmatprep.subr.bf16.mxu0 0
      %720 = vmatpush1.bf16.msra.mxu0 0
      %721 = vmatprep.subr.bf16.mxu0 0
      %722 = vmatpush1.bf16.msra.mxu0 0
      %723 = vmatprep.subr.bf16.mxu0 0
      %724 = vmatpush1.bf16.msra.mxu0 0
      %725 = vmatprep.subr.bf16.mxu0 0
      %726 = vmatpush1.bf16.msra.mxu0 0
      %727 = vmatprep.subr.bf16.mxu0 0
      %728 = vmatpush1.bf16.msra.mxu0 0
      %729 = vmatprep.subr.bf16.mxu0 0
      %730 = vmatpush1.bf16.msra.mxu0 0
      %731 = vmatprep.mubr.bf16.mxu0 0
      %732 = vmatmul.mubr.bf16.gmra.mrb[0].mxu0 %v647
      %v733 = vpop.f32.mrb[0].mxu0
      %v734 = vadd.f32 0.0, %v733
      %v735 = vpop.f32.mrb[0].mxu0
      %v736 = vpop.f32.mrb[0].mxu0
      %v737 = vpop.f32.mrb[0].mxu0
      %738 = vdwg.mxu0
      %v740 = vsel %vm265, %v616, 0
      %v743 = vsel %vm269, %v628, 0
      %v746 = vsel %vm269, %v636, 0
      %v749 = vsel %vm269, %v635, 0
      %751 = vmatprep.subr.bf16.mxu0 %v746
      %752 = vmatpush1.bf16.msra.mxu0 %v743
      %753 = vmatprep.subr.bf16.mxu0 0
      %754 = vmatpush1.bf16.msra.mxu0 0
      %755 = vmatprep.subr.bf16.mxu0 0
      %756 = vmatpush1.bf16.msra.mxu0 0
      %757 = vmatprep.subr.bf16.mxu0 0
      %758 = vmatpush1.bf16.msra.mxu0 0
      %759 = vmatprep.subr.bf16.mxu0 0
      %760 = vmatpush1.bf16.msra.mxu0 0
      %761 = vmatprep.subr.bf16.mxu0 0
      %762 = vmatpush1.bf16.msra.mxu0 0
      %763 = vmatprep.subr.bf16.mxu0 0
      %764 = vmatpush1.bf16.msra.mxu0 0
      %765 = vmatprep.subr.bf16.mxu0 0
      %766 = vmatpush1.bf16.msra.mxu0 0
      %767 = vmatprep.subr.bf16.mxu0 0
      %768 = vmatpush1.bf16.msra.mxu0 0
      %769 = vmatprep.subr.bf16.mxu0 0
      %770 = vmatpush1.bf16.msra.mxu0 0
      %771 = vmatprep.subr.bf16.mxu0 0
      %772 = vmatpush1.bf16.msra.mxu0 0
      %773 = vmatprep.subr.bf16.mxu0 0
      %774 = vmatpush1.bf16.msra.mxu0 0
      %775 = vmatprep.subr.bf16.mxu0 0
      %776 = vmatpush1.bf16.msra.mxu0 0
      %777 = vmatprep.subr.bf16.mxu0 0
      %778 = vmatpush1.bf16.msra.mxu0 0
      %779 = vmatprep.subr.bf16.mxu0 0
      %780 = vmatpush1.bf16.msra.mxu0 0
      %781 = vmatprep.subr.bf16.mxu0 0
      %782 = vmatpush1.bf16.msra.mxu0 0
      %783 = vmatprep.mubr.bf16.mxu0 0
      %784 = vmatmul.mubr.bf16.gmra.mrb[0].mxu0 %v740
      %v785 = vpop.f32.mrb[0].mxu0
      %v786 = vadd.f32 %v693, %v785
      %v787 = vpop.f32.mrb[0].mxu0
      %v788 = vadd.f32 %v695, %v787
      %v789 = vpop.f32.mrb[0].mxu0
      %v790 = vpop.f32.mrb[0].mxu0
      %791 = vdwg.mxu0
      %792 = vmatprep.subr.bf16.mxu0 0
      %793 = vmatpush1.bf16.msra.mxu0 %v749
      %794 = vmatprep.subr.bf16.mxu0 0
      %795 = vmatpush1.bf16.msra.mxu0 0
      %796 = vmatprep.subr.bf16.mxu0 0
      %797 = vmatpush1.bf16.msra.mxu0 0
      %798 = vmatprep.subr.bf16.mxu0 0
      %799 = vmatpush1.bf16.msra.mxu0 0
      %800 = vmatprep.subr.bf16.mxu0 0
      %801 = vmatpush1.bf16.msra.mxu0 0
      %802 = vmatprep.subr.bf16.mxu0 0
      %803 = vmatpush1.bf16.msra.mxu0 0
      %804 = vmatprep.subr.bf16.mxu0 0
      %805 = vmatpush1.bf16.msra.mxu0 0
      %806 = vmatprep.subr.bf16.mxu0 0
      %807 = vmatpush1.bf16.msra.mxu0 0
      %808 = vmatprep.subr.bf16.mxu0 0
      %809 = vmatpush1.bf16.msra.mxu0 0
      %810 = vmatprep.subr.bf16.mxu0 0
      %811 = vmatpush1.bf16.msra.mxu0 0
      %812 = vmatprep.subr.bf16.mxu0 0
      %813 = vmatpush1.bf16.msra.mxu0 0
      %814 = vmatprep.subr.bf16.mxu0 0
      %815 = vmatpush1.bf16.msra.mxu0 0
      %816 = vmatprep.subr.bf16.mxu0 0
      %817 = vmatpush1.bf16.msra.mxu0 0
      %818 = vmatprep.subr.bf16.mxu0 0
      %819 = vmatpush1.bf16.msra.mxu0 0
      %820 = vmatprep.subr.bf16.mxu0 0
      %821 = vmatpush1.bf16.msra.mxu0 0
      %822 = vmatprep.subr.bf16.mxu0 0
      %823 = vmatpush1.bf16.msra.mxu0 0
      %824 = vmatprep.mubr.bf16.mxu0 0
      %825 = vmatmul.mubr.bf16.gmra.mrb[0].mxu0 %v740
      %v826 = vpop.f32.mrb[0].mxu0
      %v827 = vadd.f32 %v734, %v826
      %v828 = vpop.f32.mrb[0].mxu0
      %v829 = vpop.f32.mrb[0].mxu0
      %v830 = vpop.f32.mrb[0].mxu0
      %831 = vdwg.mxu0
      %s832 = scalar_lea.vmem %s2, 8
      %v833 = vld [vmem:[%s832] sm:$0xf]
      %v834 = vld [vmem:[#allocation2] sm:$0x3f]
      %v836 = vcombine.high %v834, %v834
      %v838 = vunpack.c.l.s4 1983009808
      %v839 = vunpack.c.0.s8 %v838
      %v840 = vlaneseq
      %v841 = vshrl.u32 %v840, 7
      %v842 = vsub.s32 %v839, %v841
      %v843 = vrot.slane %v834, %v842
      %v845 = vunpack.c.l.s4 1983009808
      %v846 = vunpack.c.0.s8 %v845
      %v847 = vlaneseq
      %v848 = vshrl.u32 %v847, 7
      %v849 = vsub.s32 %v846, %v848
      %v850 = vrot.slane %v836, %v849
      %v851 = vcombine.high %v843, %v843
      %852 = vrot.lane.b32.xlu0 %v843, 126
      %v853 = vpop.permute.xlu0 %852
      %854 = vrot.lane.b32.xlu0 %v851, 126
      %v855 = vpop.permute.xlu0 %854
      %856 = vrot.lane.b32.xlu0 %v850, 126
      %v857 = vpop.permute.xlu0 %856
      %vm858 = vcmask 1031168
      %v859 = vsel %vm858, %v853, %v855
      %v860 = vsel %vm858, %v855, %v857
      %v862 = vsel %vm265, %v833, 0
      %v865 = vsel %vm269, %v859, 0
      %v868 = vsel %vm269, %v860, 0
      %v871 = vsel %vm269, %v857, 0
      %873 = vmatprep.subr.bf16.mxu0 %v868
      %874 = vmatpush1.bf16.msra.mxu0 %v865
      %875 = vmatprep.subr.bf16.mxu0 0
      %876 = vmatpush1.bf16.msra.mxu0 0
      %877 = vmatprep.subr.bf16.mxu0 0
      %878 = vmatpush1.bf16.msra.mxu0 0
      %879 = vmatprep.subr.bf16.mxu0 0
      %880 = vmatpush1.bf16.msra.mxu0 0
      %881 = vmatprep.subr.bf16.mxu0 0
      %882 = vmatpush1.bf16.msra.mxu0 0
      %883 = vmatprep.subr.bf16.mxu0 0
      %884 = vmatpush1.bf16.msra.mxu0 0
      %885 = vmatprep.subr.bf16.mxu0 0
      %886 = vmatpush1.bf16.msra.mxu0 0
      %887 = vmatprep.subr.bf16.mxu0 0
      %888 = vmatpush1.bf16.msra.mxu0 0
      %889 = vmatprep.subr.bf16.mxu0 0
      %890 = vmatpush1.bf16.msra.mxu0 0
      %891 = vmatprep.subr.bf16.mxu0 0
      %892 = vmatpush1.bf16.msra.mxu0 0
      %893 = vmatprep.subr.bf16.mxu0 0
      %894 = vmatpush1.bf16.msra.mxu0 0
      %895 = vmatprep.subr.bf16.mxu0 0
      %896 = vmatpush1.bf16.msra.mxu0 0
      %897 = vmatprep.subr.bf16.mxu0 0
      %898 = vmatpush1.bf16.msra.mxu0 0
      %899 = vmatprep.subr.bf16.mxu0 0
      %900 = vmatpush1.bf16.msra.mxu0 0
      %901 = vmatprep.subr.bf16.mxu0 0
      %902 = vmatpush1.bf16.msra.mxu0 0
      %903 = vmatprep.subr.bf16.mxu0 0
      %904 = vmatpush1.bf16.msra.mxu0 0
      %905 = vmatprep.mubr.bf16.mxu0 0
      %906 = vmatmul.mubr.bf16.gmra.mrb[0].mxu0 %v862
      %v907 = vpop.f32.mrb[0].mxu0
      %v908 = vadd.f32 0.0, %v907
      %v909 = vpop.f32.mrb[0].mxu0
      %v910 = vadd.f32 0.0, %v909
      %v911 = vpop.f32.mrb[0].mxu0
      %v912 = vpop.f32.mrb[0].mxu0
      %913 = vdwg.mxu0
      %914 = vmatprep.subr.bf16.mxu0 0
      %915 = vmatpush1.bf16.msra.mxu0 %v871
      %916 = vmatprep.subr.bf16.mxu0 0
      %917 = vmatpush1.bf16.msra.mxu0 0
      %918 = vmatprep.subr.bf16.mxu0 0
      %919 = vmatpush1.bf16.msra.mxu0 0
      %920 = vmatprep.subr.bf16.mxu0 0
      %921 = vmatpush1.bf16.msra.mxu0 0
      %922 = vmatprep.subr.bf16.mxu0 0
      %923 = vmatpush1.bf16.msra.mxu0 0
      %924 = vmatprep.subr.bf16.mxu0 0
      %925 = vmatpush1.bf16.msra.mxu0 0
      %926 = vmatprep.subr.bf16.mxu0 0
      %927 = vmatpush1.bf16.msra.mxu0 0
      %928 = vmatprep.subr.bf16.mxu0 0
      %929 = vmatpush1.bf16.msra.mxu0 0
      %930 = vmatprep.subr.bf16.mxu0 0
      %931 = vmatpush1.bf16.msra.mxu0 0
      %932 = vmatprep.subr.bf16.mxu0 0
      %933 = vmatpush1.bf16.msra.mxu0 0
      %934 = vmatprep.subr.bf16.mxu0 0
      %935 = vmatpush1.bf16.msra.mxu0 0
      %936 = vmatprep.subr.bf16.mxu0 0
      %937 = vmatpush1.bf16.msra.mxu0 0
      %938 = vmatprep.subr.bf16.mxu0 0
      %939 = vmatpush1.bf16.msra.mxu0 0
      %940 = vmatprep.subr.bf16.mxu0 0
      %941 = vmatpush1.bf16.msra.mxu0 0
      %942 = vmatprep.subr.bf16.mxu0 0
      %943 = vmatpush1.bf16.msra.mxu0 0
      %944 = vmatprep.subr.bf16.mxu0 0
      %945 = vmatpush1.bf16.msra.mxu0 0
      %946 = vmatprep.mubr.bf16.mxu0 0
      %947 = vmatmul.mubr.bf16.gmra.mrb[0].mxu0 %v862
      %v948 = vpop.f32.mrb[0].mxu0
      %v949 = vadd.f32 0.0, %v948
      %v950 = vpop.f32.mrb[0].mxu0
      %v951 = vpop.f32.mrb[0].mxu0
      %v952 = vpop.f32.mrb[0].mxu0
      %953 = vdwg.mxu0
      %v954 = vadd.f32 %v786, %v908
      %v955 = vadd.f32 %v788, %v910
      %v956 = vadd.f32 %v827, %v949
      %v957 = vld [vmem:[%s3] sm:$0x7]
      %v959 = vlaneseq
      %v960 = vshrl.u32 %v959, 7
      %v961 = vsub.s32 0, %v960
      %v962 = vrot.slane %v957, %v961
      %v963 = vlaneseq
      %v964 = vshrl.u32 %v963, 7
      %v965 = vsub.s32 1, %v964
      %v966 = vrot.slane %v957, %v965
      %v967 = vlaneseq
      %v968 = vshrl.u32 %v967, 7
      %v969 = vsub.s32 2, %v968
      %v970 = vrot.slane %v957, %v969
      %v974 = vmul.f32 %v954, %v962
      %v975 = vmul.f32 %v955, %v966
      %v976 = vmul.f32 %v956, %v970
      %v977 = vadd.f32 %v974, %v975
      %vm978 = vcmask 850944
      %v979 = vsel %vm978, %v976, 0.0
      %v980 = vadd.f32 %v977, %v979
      %981 = vadd.xlane.f32.xlu0 %v980
      %v982 = vpop.xlane.xlu0 %981
      %vm983 = vcmask 7168
      %984 = vst.msk [vmem:[%s229] sm:$0xff] %vm983, %v982
      %v985 = vmul.f32 %v974, %v974
      %v986 = vmul.f32 %v975, %v975
      %v987 = vmul.f32 %v976, %v976
      %v988 = vadd.f32 %v985, %v986
      %v989 = vsel %vm978, %v987, 0.0
      %v990 = vadd.f32 %v988, %v989
      %991 = vadd.xlane.f32.xlu0 %v990
      %v992 = vpop.xlane.xlu0 %991
      %993 = vst.msk [vmem:[%s233] sm:$0xff] %vm983, %v992
      %p994 = scmp.lt.s32.totalorder %s17, 1
      %s995 = scalar_select %p994, %s17, 1
      %s996 = smul.addr %s995, 8
      %s997 = scalar_lea.vmem %s4, %s996
      %p998 = scmp.lt.s32.totalorder %s17, 1
      %s999 = scalar_select %p998, %s17, 1
      %s1000 = smul.addr %s999, 8
      %s1001 = scalar_lea.vmem %s5, %s1000
      // Predicated region
      $region37: #{fac_conv_forward.2} parent=35 // pred_check
        %p1002 = pneg %p124
      $region38: #{fac_conv_forward.2} parent=35 // pred_check_branch
        %1004 = sbr.rel (%p1002) target = $region40
      $region39: #{fac_conv_forward.2} parent=35 // pred_region
        _
      $region40: #{fac_conv_forward.2} parent=35 // pred_fallthru
        _
      // Predicated region
      $region41: #{fac_conv_forward.2} parent=35 // pred_check
        %p1005 = pneg %p150
      $region42: #{fac_conv_forward.2} parent=35 // pred_check_branch
        %1007 = sbr.rel (%p1005) target = $region44
      $region43: #{fac_conv_forward.2} parent=35 // pred_region
        _
      $region44: #{fac_conv_forward.2} parent=35 // pred_fallthru
        _
    $region36: #{fac_conv_forward.2} parent=5 // pred_fallthru
      _
    %p1008 = scmp.le.s32.totalorder 2, %s12
    // Predicated region
    $region45: #{fac_conv_forward.2} parent=5 // pred_check
      %p1009 = pneg %p1008
    $region46: #{fac_conv_forward.2} parent=5 // pred_check_branch
      %1011 = sbr.rel (%p1009) target = $region48
    $region47: #{fac_conv_forward.2} parent=5 // pred_region
      %s1012 = ssub.s32 %s12, 2
      // Predicated region
      $region49: #{fac_conv_forward.2} parent=47 // pred_check
        %p1013 = pneg %p130
      $region50: #{fac_conv_forward.2} parent=47 // pred_check_branch
        %1015 = sbr.rel (%p1013) target = $region52
      $region51: #{fac_conv_forward.2} parent=47 // pred_region
        %p1016 = scmp.lt.s32.totalorder %s18, 1
        %s1017 = scalar_select %p1016, %s18, 1
        %s1018 = smul.addr %s1017, 8
        %s1019 = scalar_lea.vmem %s4, %s1018
      $region52: #{fac_conv_forward.2} parent=47 // pred_fallthru
        _
      // Predicated region
      $region53: #{fac_conv_forward.2} parent=47 // pred_check
        %p1020 = pneg %p156
      $region54: #{fac_conv_forward.2} parent=47 // pred_check_branch
        %1022 = sbr.rel (%p1020) target = $region56
      $region55: #{fac_conv_forward.2} parent=47 // pred_region
        %p1023 = scmp.lt.s32.totalorder %s18, 1
        %s1024 = scalar_select %p1023, %s18, 1
        %s1025 = smul.addr %s1024, 8
        %s1026 = scalar_lea.vmem %s5, %s1025
      $region56: #{fac_conv_forward.2} parent=47 // pred_fallthru
        _
    $region48: #{fac_conv_forward.2} parent=5 // pred_fallthru
      _
  $region6: #{fac_conv_forward.2} parent=0 // loop_footer
    %s16 = sadd.s32 1, %s12
  $region7: #{fac_conv_forward.2} parent=0 // loop_footer_branch
    %11 = sbr.rel target = $region3
  $region8: #{fac_conv_forward.2} parent=0 // loop_exit
    _

</llo_original>
